<compile_context>
chip_gen: v6e
topology: v6e:2x2x1
jax: 0.10.0
libtpu: 0.0.40
codegen_flags: <defaults>
</compile_context>

<pallas_src>
import functools

import jax
import jax.numpy as jnp
from jax.experimental import pallas as pl
from jax.experimental.pallas import tpu as pltpu


def _round_up(x, m):
    return (x + m - 1) // m * m


def _inception_mfm_kernel(xp_ref, w_ref, o_ref, patch_ref,
                          *, K, Cin, C_out, Wp, Mp, B):
    """One grid step = B batch images, both conv branches fused.

    xp_ref   : (B, Cin, Lpad)            bf16 flattened, zero-padded images
    w_ref    : (2*C_out, K*K*Cin + 1)    bf16 fused weights, last col = bias
    o_ref    : (B, C_out, Mp)            f32 fused MFM output (spatial in lanes)
    patch_ref: (K*K*Cin + 1, B*Mp)       bf16 VMEM im2col scratch
    """
    KKC = K * K * Cin

    # Bias row: all-ones so the weight's bias column is applied by the same
    # MXU contraction (no separate broadcast add, no extra VMEM operand).
    patch_ref[KKC:KKC + 1, :] = jnp.ones((1, B * Mp), dtype=patch_ref.dtype)

    # im2col, spatial-in-lanes.  For tap (kh, kw) the source is a contiguous
    # lane window of the flattened padded image starting at off = kh*Wp + kw,
    # so every write is a lane-dense (Cin, Mp) slab -> unmasked wide stores,
    # no per-tap relayout.  Static Python loops -> fully unrolled.
    for bi in range(B):
        img = xp_ref[bi]                         # (Cin, Lpad), one load / image
        col0 = bi * Mp
        for kh in range(K):
            for kw in range(K):
                t = kh * K + kw
                off = kh * Wp + kw
                patch_ref[t * Cin:(t + 1) * Cin, col0:col0 + Mp] = \
                    img[:, off:off + Mp]

    # One MXU contraction, standard (M,K)x(K,N) orientation, f32 accumulate:
    # (2*C_out, KKC+1) . (KKC+1, B*Mp) -> (2*C_out, B*Mp).
    acc = jax.lax.dot_general(
        w_ref[...], patch_ref[...],
        dimension_numbers=(((1,), (0,)), ((), ())),
        preferred_element_type=jnp.float32)

    # MFM max-out for both branches at once.  Row order of the fused weights is
    # [w1_a, w2_a, w1_b, w2_b], so the half-split max gives
    # [mfm(branch1), mfm(branch2)] (f32, sublane-aligned split).
    out = jnp.maximum(acc[:C_out, :], acc[C_out:, :])        # (C_out, B*Mp)

    for bi in range(B):
        o_ref[bi, :, :] = out[:, bi * Mp:(bi + 1) * Mp].astype(o_ref.dtype)


def prepare_fused_params(params, k1=3, k2=5):
    """One-time (outside the forward path) fusion of both branches' weights.

    Zero-pads the smaller kernel onto the larger KxK tap grid (centered),
    interleaves the MFM halves of both branches (rows = [w1_a, w2_a, w1_b,
    w2_b]), flattens taps in (kh, kw, cin) order to match the kernel's im2col
    row order, and appends the bias as an extra bf16 column.
    Returns a (2*out_channels, K*K*Cin + 1) bf16 array.
    """
    w1, b1, w2, b2 = params["w1"], params["b1"], params["w2"], params["b2"]
    assert k1 % 2 == 1 and k2 % 2 == 1, "kernel sizes must be odd (pad = K//2)"
    K = max(k1, k2)
    c_half = w1.shape[0] // 2          # per-branch MFM output channels
    Cin = w1.shape[1]

    def pad_taps(w, k):
        off = (K - k) // 2
        return jnp.pad(w, ((0, 0), (0, 0),
                           (off, K - k - off), (off, K - k - off)))

    w1p, w2p = pad_taps(w1, k1), pad_taps(w2, k2)
    w_comb = jnp.concatenate(
        [w1p[:c_half], w2p[:c_half], w1p[c_half:], w2p[c_half:]], axis=0)
    b_comb = jnp.concatenate(
        [b1[:c_half], b2[:c_half], b1[c_half:], b2[c_half:]], axis=0)

    w_flat = jnp.transpose(w_comb, (0, 2, 3, 1)).reshape(w_comb.shape[0],
                                                         K * K * Cin)
    w_fused = jnp.concatenate([w_flat, b_comb[:, None]], axis=1)
    return w_fused.astype(jnp.bfloat16)


def _pick_batch_block(N, per_image_bytes, budget_bytes=8 * 1024 * 1024):
    """Largest divisor of N that keeps the per-step VMEM footprint modest
    (and <= 64 images, so large batches still expose several parallel grid
    steps for v7x's two TensorCores)."""
    cap = max(1, min(64, budget_bytes // max(per_image_bytes, 1)))
    best = 1
    for d in range(1, N + 1):
        if N % d == 0 and d <= cap:
            best = d
    return best


def inception_mfm_forward(x_nchw, w_fused):
    """inception_mfm.forward: cat(mfm(conv_k1(x)), mfm(conv_k2(x))) on channels.

    `w_fused` is the pre-fused weight from prepare_fused_params (computed once,
    not per forward call).
    """
    N, Cin, H, W = x_nchw.shape
    two_cout, cols = w_fused.shape
    C_out = two_cout // 2                         # module output channels
    KK = (cols - 1) // Cin
    K = int(round(KK ** 0.5))
    assert K * K * Cin + 1 == cols, "fused weight layout mismatch"
    assert K % 2 == 1, "fused kernel size must be odd"
    # Fail loudly on shapes that would break the sublane-aligned MFM split /
    # lane-dense output stores instead of hitting an obscure lowering error.
    assert C_out % 8 == 0, "out_channels must be a multiple of 8"

    pad = K // 2
    Hp, Wp = H + 2 * pad, W + 2 * pad
    Mp = _round_up(H * Wp, 128)                   # lane-padded spatial extent
    max_off = (K - 1) * (Wp + 1)                  # largest tap offset kh*Wp+kw
    Lpad = _round_up(max_off + Mp, 128)           # flat input length incl. tail

    # Single input pass, NO transpose: pad spatially, flatten H/W into lanes,
    # zero-pad the tail so every tap's lane window stays in bounds, cast bf16.
    xp = jnp.pad(x_nchw, ((0, 0), (0, 0), (pad, pad), (pad, pad)))
    xp = xp.reshape(N, Cin, Hp * Wp)
    xp = jnp.pad(xp, ((0, 0), (0, 0), (0, Lpad - Hp * Wp))).astype(jnp.bfloat16)

    per_image_bytes = Cin * Lpad * 2 + cols * Mp * 2 + C_out * Mp * 4
    B = _pick_batch_block(N, per_image_bytes)

    # VMEM budget derived from the actual block sizes (double-buffered blocks
    # + im2col scratch) with generous slack, instead of a fixed constant.
    in_block = B * Cin * Lpad * 2
    w_block = two_cout * cols * 2
    out_block = B * C_out * Mp * 4
    patch_block = cols * B * Mp * 2
    vmem_limit = int(min(64 * 1024 * 1024,
                         max(4 * 1024 * 1024,
                             2 * (2 * in_block + 2 * w_block +
                                  2 * out_block + patch_block))))

    kernel = functools.partial(_inception_mfm_kernel,
                               K=K, Cin=Cin, C_out=C_out, Wp=Wp, Mp=Mp, B=B)

    out = pl.pallas_call(
        kernel,
        out_shape=jax.ShapeDtypeStruct((N, C_out, Mp), jnp.float32),
        grid_spec=pltpu.PrefetchScalarGridSpec(
            num_scalar_prefetch=0,
            grid=(N // B,),
            in_specs=[
                pl.BlockSpec((B, Cin, Lpad), lambda n: (n, 0, 0)),
                pl.BlockSpec((two_cout, cols), lambda n: (0, 0)),
            ],
            out_specs=pl.BlockSpec((B, C_out, Mp), lambda n: (n, 0, 0)),
            scratch_shapes=[pltpu.VMEM((cols, B * Mp), jnp.bfloat16)],
        ),
        compiler_params=pltpu.CompilerParams(
            dimension_semantics=("parallel",),
            vmem_limit_bytes=vmem_limit,
        ),
    )(xp, w_fused)

    # (N, C_out, Mp) -> drop lane padding -> (N, C_out, H, Wp) -> drop the
    # per-row halo columns -> NCHW.  Tiny strided slice, handled by XLA.
    return out[:, :, :H * Wp].reshape(N, C_out, H, Wp)[:, :, :, :W]


def init_params(key, in_channels, out_channels, k1=3, k2=5):
    assert out_channels % 2 == 0
    ch = out_channels // 2             # each branch's MFM output channels
    k_a, k_b, k_c, k_d = jax.random.split(key, 4)

    def u(k, shape, fan_in):
        bound = 1.0 / jnp.sqrt(fan_in)
        return jax.random.uniform(k, shape, jnp.float32, -bound, bound)

    return {
        "w1": u(k_a, (2 * ch, in_channels, k1, k1), in_channels * k1 * k1),
        "b1": u(k_b, (2 * ch,), in_channels * k1 * k1),
        "w2": u(k_c, (2 * ch, in_channels, k2, k2), in_channels * k2 * k2),
        "b2": u(k_d, (2 * ch,), in_channels * k2 * k2),
    }


def _reference(x_nchw, params, k1=3, k2=5, bf16_inputs=False):
    """Pure-JAX reference (lax conv). bf16_inputs=True mirrors the kernel's
    bf16-operand / f32-accumulate numerics (including the bf16-rounded bias
    that is folded into the kernel's matmul)."""
    def branch(w, b, k):
        pad = k // 2
        if bf16_inputs:
            xx, ww = x_nchw.astype(jnp.bfloat16), w.astype(jnp.bfloat16)
            bb = b.astype(jnp.bfloat16).astype(jnp.float32)
        else:
            xx, ww, bb = x_nchw, w, b
        y = jax.lax.conv_general_dilated(
            xx, ww, window_strides=(1, 1),
            padding=((pad, pad), (pad, pad)),
            dimension_numbers=("NCHW", "OIHW", "NCHW"),
            preferred_element_type=jnp.float32)
        y = y + bb[None, :, None, None]
        ch = w.shape[0] // 2
        return jnp.maximum(y[:, :ch], y[:, ch:])

    return jnp.concatenate([branch(params["w1"], params["b1"], k1),
                            branch(params["w2"], params["b2"], k2)], axis=1)


if __name__ == "__main__":
    key = jax.random.PRNGKey(0)
    k_x, k_p = jax.random.split(key)

    N, Cin, H, W = 2, 4, 16, 16
    out_channels = 8                   # inception output channels (4 per branch)

    x = jax.random.normal(k_x, (N, Cin, H, W), dtype=jnp.float32)
    params = init_params(k_p, Cin, out_channels)

    # Weight fusion is done ONCE, outside the forward path.
    w_fused = jax.block_until_ready(prepare_fused_params(params))

    fwd = jax.jit(inception_mfm_forward)
    out = jax.block_until_ready(fwd(x, w_fused))
    assert out.shape == (N, out_channels, H, W), out.shape

    # Tight check against a reference with matching bf16-operand numerics,
    # plus a looser semantic check against the full-f32 reference.
    ref_bf16 = jax.block_until_ready(_reference(x, params, bf16_inputs=True))
    ref_f32 = jax.block_until_ready(_reference(x, params, bf16_inputs=False))
    assert jnp.allclose(out, ref_bf16, atol=2e-3, rtol=2e-3)
    assert jnp.allclose(out, ref_f32, atol=5e-2, rtol=5e-2)

    print("KERNEL_OK")
</pallas_src>

<mosaic_0001>
module attributes {stable_mosaic.version = 11 : i64} {
  func.func @_inception_mfm_kernel(%arg0: i32, %arg1: memref<2x4x512xbf16, #tpu.memory_space<vmem>>, %arg2: memref<16x101xbf16, #tpu.memory_space<vmem>>, %arg3: memref<2x8x384xf32, #tpu.memory_space<vmem>>, %arg4: memref<101x768xbf16, #tpu.memory_space<vmem>>) attributes {dimension_semantics = [#tpu.dimension_semantics<parallel>], iteration_bounds = array<i64: 1>, scalar_prefetch = 0 : i64, scratch_operands = 1 : i64, tpu.core_type = #tpu.core_type<tc>, window_params = [{transform_indices = @transform_0, window_bounds = array<i64: 2, 4, 512>}, {pipeline_mode = #tpu.pipeline_mode<synchronous>, transform_indices = @transform_1, window_bounds = array<i64: 16, 101>}, {transform_indices = @transform_2, window_bounds = array<i64: 2, 8, 384>}]} {
    %cst = arith.constant 1.000000e+00 : bf16
    %0 = vector.broadcast %cst : bf16 to vector<1x768xbf16>
    %c100 = arith.constant 100 : index
    %c0 = arith.constant 0 : index
    %1 = vector.load %arg4[%c100, %c0] : memref<101x768xbf16, #tpu.memory_space<vmem>>, vector<1x768xbf16>
    tpu.vector_store %arg4[%c100, %c0], %0 {strides = array<i32>} : memref<101x768xbf16, #tpu.memory_space<vmem>>, vector<1x768xbf16>,
    %c0_0 = arith.constant 0 : index
    %c0_1 = arith.constant 0 : index
    %c0_2 = arith.constant 0 : index
    %2 = vector.load %arg1[%c0_0, %c0_1, %c0_2] : memref<2x4x512xbf16, #tpu.memory_space<vmem>>, vector<1x4x512xbf16>
    %3 = vector.shape_cast %2 : vector<1x4x512xbf16> to vector<4x512xbf16>
    %4 = vector.extract_strided_slice %3 {offsets = [0, 0], sizes = [4, 384], strides = [1, 1]} : vector<4x512xbf16> to vector<4x384xbf16>
    %c0_3 = arith.constant 0 : index
    %c0_4 = arith.constant 0 : index
    %5 = vector.load %arg4[%c0_3, %c0_4] : memref<101x768xbf16, #tpu.memory_space<vmem>>, vector<4x384xbf16>
    tpu.vector_store %arg4[%c0_3, %c0_4], %4 {strides = array<i32>} : memref<101x768xbf16, #tpu.memory_space<vmem>>, vector<4x384xbf16>,
    %6 = vector.extract_strided_slice %3 {offsets = [0, 1], sizes = [4, 384], strides = [1, 1]} : vector<4x512xbf16> to vector<4x384xbf16>
    %c4 = arith.constant 4 : index
    %c0_5 = arith.constant 0 : index
    %7 = vector.load %arg4[%c4, %c0_5] : memref<101x768xbf16, #tpu.memory_space<vmem>>, vector<4x384xbf16>
    tpu.vector_store %arg4[%c4, %c0_5], %6 {strides = array<i32>} : memref<101x768xbf16, #tpu.memory_space<vmem>>, vector<4x384xbf16>,
    %8 = vector.extract_strided_slice %3 {offsets = [0, 2], sizes = [4, 384], strides = [1, 1]} : vector<4x512xbf16> to vector<4x384xbf16>
    %c8 = arith.constant 8 : index
    %c0_6 = arith.constant 0 : index
    %9 = vector.load %arg4[%c8, %c0_6] : memref<101x768xbf16, #tpu.memory_space<vmem>>, vector<4x384xbf16>
    tpu.vector_store %arg4[%c8, %c0_6], %8 {strides = array<i32>} : memref<101x768xbf16, #tpu.memory_space<vmem>>, vector<4x384xbf16>,
    %10 = vector.extract_strided_slice %3 {offsets = [0, 3], sizes = [4, 384], strides = [1, 1]} : vector<4x512xbf16> to vector<4x384xbf16>
    %c12 = arith.constant 12 : index
    %c0_7 = arith.constant 0 : index
    %11 = vector.load %arg4[%c12, %c0_7] : memref<101x768xbf16, #tpu.memory_space<vmem>>, vector<4x384xbf16>
    tpu.vector_store %arg4[%c12, %c0_7], %10 {strides = array<i32>} : memref<101x768xbf16, #tpu.memory_space<vmem>>, vector<4x384xbf16>,
    %12 = vector.extract_strided_slice %3 {offsets = [0, 4], sizes = [4, 384], strides = [1, 1]} : vector<4x512xbf16> to vector<4x384xbf16>
    %c16 = arith.constant 16 : index
    %c0_8 = arith.constant 0 : index
    %13 = vector.load %arg4[%c16, %c0_8] : memref<101x768xbf16, #tpu.memory_space<vmem>>, vector<4x384xbf16>
    tpu.vector_store %arg4[%c16, %c0_8], %12 {strides = array<i32>} : memref<101x768xbf16, #tpu.memory_space<vmem>>, vector<4x384xbf16>,
    %14 = vector.extract_strided_slice %3 {offsets = [0, 20], sizes = [4, 384], strides = [1, 1]} : vector<4x512xbf16> to vector<4x384xbf16>
    %c20 = arith.constant 20 : index
    %c0_9 = arith.constant 0 : index
    %15 = vector.load %arg4[%c20, %c0_9] : memref<101x768xbf16, #tpu.memory_space<vmem>>, vector<4x384xbf16>
    tpu.vector_store %arg4[%c20, %c0_9], %14 {strides = array<i32>} : memref<101x768xbf16, #tpu.memory_space<vmem>>, vector<4x384xbf16>,
    %16 = vector.extract_strided_slice %3 {offsets = [0, 21], sizes = [4, 384], strides = [1, 1]} : vector<4x512xbf16> to vector<4x384xbf16>
    %c24 = arith.constant 24 : index
    %c0_10 = arith.constant 0 : index
    %17 = vector.load %arg4[%c24, %c0_10] : memref<101x768xbf16, #tpu.memory_space<vmem>>, vector<4x384xbf16>
    tpu.vector_store %arg4[%c24, %c0_10], %16 {strides = array<i32>} : memref<101x768xbf16, #tpu.memory_space<vmem>>, vector<4x384xbf16>,
    %18 = vector.extract_strided_slice %3 {offsets = [0, 22], sizes = [4, 384], strides = [1, 1]} : vector<4x512xbf16> to vector<4x384xbf16>
    %c28 = arith.constant 28 : index
    %c0_11 = arith.constant 0 : index
    %19 = vector.load %arg4[%c28, %c0_11] : memref<101x768xbf16, #tpu.memory_space<vmem>>, vector<4x384xbf16>
    tpu.vector_store %arg4[%c28, %c0_11], %18 {strides = array<i32>} : memref<101x768xbf16, #tpu.memory_space<vmem>>, vector<4x384xbf16>,
    %20 = vector.extract_strided_slice %3 {offsets = [0, 23], sizes = [4, 384], strides = [1, 1]} : vector<4x512xbf16> to vector<4x384xbf16>
    %c32 = arith.constant 32 : index
    %c0_12 = arith.constant 0 : index
    %21 = vector.load %arg4[%c32, %c0_12] : memref<101x768xbf16, #tpu.memory_space<vmem>>, vector<4x384xbf16>
    tpu.vector_store %arg4[%c32, %c0_12], %20 {strides = array<i32>} : memref<101x768xbf16, #tpu.memory_space<vmem>>, vector<4x384xbf16>,
    %22 = vector.extract_strided_slice %3 {offsets = [0, 24], sizes = [4, 384], strides = [1, 1]} : vector<4x512xbf16> to vector<4x384xbf16>
    %c36 = arith.constant 36 : index
    %c0_13 = arith.constant 0 : index
    %23 = vector.load %arg4[%c36, %c0_13] : memref<101x768xbf16, #tpu.memory_space<vmem>>, vector<4x384xbf16>
    tpu.vector_store %arg4[%c36, %c0_13], %22 {strides = array<i32>} : memref<101x768xbf16, #tpu.memory_space<vmem>>, vector<4x384xbf16>,
    %24 = vector.extract_strided_slice %3 {offsets = [0, 40], sizes = [4, 384], strides = [1, 1]} : vector<4x512xbf16> to vector<4x384xbf16>
    %c40 = arith.constant 40 : index
    %c0_14 = arith.constant 0 : index
    %25 = vector.load %arg4[%c40, %c0_14] : memref<101x768xbf16, #tpu.memory_space<vmem>>, vector<4x384xbf16>
    tpu.vector_store %arg4[%c40, %c0_14], %24 {strides = array<i32>} : memref<101x768xbf16, #tpu.memory_space<vmem>>, vector<4x384xbf16>,
    %26 = vector.extract_strided_slice %3 {offsets = [0, 41], sizes = [4, 384], strides = [1, 1]} : vector<4x512xbf16> to vector<4x384xbf16>
    %c44 = arith.constant 44 : index
    %c0_15 = arith.constant 0 : index
    %27 = vector.load %arg4[%c44, %c0_15] : memref<101x768xbf16, #tpu.memory_space<vmem>>, vector<4x384xbf16>
    tpu.vector_store %arg4[%c44, %c0_15], %26 {strides = array<i32>} : memref<101x768xbf16, #tpu.memory_space<vmem>>, vector<4x384xbf16>,
    %28 = vector.extract_strided_slice %3 {offsets = [0, 42], sizes = [4, 384], strides = [1, 1]} : vector<4x512xbf16> to vector<4x384xbf16>
    %c48 = arith.constant 48 : index
    %c0_16 = arith.constant 0 : index
    %29 = vector.load %arg4[%c48, %c0_16] : memref<101x768xbf16, #tpu.memory_space<vmem>>, vector<4x384xbf16>
    tpu.vector_store %arg4[%c48, %c0_16], %28 {strides = array<i32>} : memref<101x768xbf16, #tpu.memory_space<vmem>>, vector<4x384xbf16>,
    %30 = vector.extract_strided_slice %3 {offsets = [0, 43], sizes = [4, 384], strides = [1, 1]} : vector<4x512xbf16> to vector<4x384xbf16>
    %c52 = arith.constant 52 : index
    %c0_17 = arith.constant 0 : index
    %31 = vector.load %arg4[%c52, %c0_17] : memref<101x768xbf16, #tpu.memory_space<vmem>>, vector<4x384xbf16>
    tpu.vector_store %arg4[%c52, %c0_17], %30 {strides = array<i32>} : memref<101x768xbf16, #tpu.memory_space<vmem>>, vector<4x384xbf16>,
    %32 = vector.extract_strided_slice %3 {offsets = [0, 44], sizes = [4, 384], strides = [1, 1]} : vector<4x512xbf16> to vector<4x384xbf16>
    %c56 = arith.constant 56 : index
    %c0_18 = arith.constant 0 : index
    %33 = vector.load %arg4[%c56, %c0_18] : memref<101x768xbf16, #tpu.memory_space<vmem>>, vector<4x384xbf16>
    tpu.vector_store %arg4[%c56, %c0_18], %32 {strides = array<i32>} : memref<101x768xbf16, #tpu.memory_space<vmem>>, vector<4x384xbf16>,
    %34 = vector.extract_strided_slice %3 {offsets = [0, 60], sizes = [4, 384], strides = [1, 1]} : vector<4x512xbf16> to vector<4x384xbf16>
    %c60 = arith.constant 60 : index
    %c0_19 = arith.constant 0 : index
    %35 = vector.load %arg4[%c60, %c0_19] : memref<101x768xbf16, #tpu.memory_space<vmem>>, vector<4x384xbf16>
    tpu.vector_store %arg4[%c60, %c0_19], %34 {strides = array<i32>} : memref<101x768xbf16, #tpu.memory_space<vmem>>, vector<4x384xbf16>,
    %36 = vector.extract_strided_slice %3 {offsets = [0, 61], sizes = [4, 384], strides = [1, 1]} : vector<4x512xbf16> to vector<4x384xbf16>
    %c64 = arith.constant 64 : index
    %c0_20 = arith.constant 0 : index
    %37 = vector.load %arg4[%c64, %c0_20] : memref<101x768xbf16, #tpu.memory_space<vmem>>, vector<4x384xbf16>
    tpu.vector_store %arg4[%c64, %c0_20], %36 {strides = array<i32>} : memref<101x768xbf16, #tpu.memory_space<vmem>>, vector<4x384xbf16>,
    %38 = vector.extract_strided_slice %3 {offsets = [0, 62], sizes = [4, 384], strides = [1, 1]} : vector<4x512xbf16> to vector<4x384xbf16>
    %c68 = arith.constant 68 : index
    %c0_21 = arith.constant 0 : index
    %39 = vector.load %arg4[%c68, %c0_21] : memref<101x768xbf16, #tpu.memory_space<vmem>>, vector<4x384xbf16>
    tpu.vector_store %arg4[%c68, %c0_21], %38 {strides = array<i32>} : memref<101x768xbf16, #tpu.memory_space<vmem>>, vector<4x384xbf16>,
    %40 = vector.extract_strided_slice %3 {offsets = [0, 63], sizes = [4, 384], strides = [1, 1]} : vector<4x512xbf16> to vector<4x384xbf16>
    %c72 = arith.constant 72 : index
    %c0_22 = arith.constant 0 : index
    %41 = vector.load %arg4[%c72, %c0_22] : memref<101x768xbf16, #tpu.memory_space<vmem>>, vector<4x384xbf16>
    tpu.vector_store %arg4[%c72, %c0_22], %40 {strides = array<i32>} : memref<101x768xbf16, #tpu.memory_space<vmem>>, vector<4x384xbf16>,
    %42 = vector.extract_strided_slice %3 {offsets = [0, 64], sizes = [4, 384], strides = [1, 1]} : vector<4x512xbf16> to vector<4x384xbf16>
    %c76 = arith.constant 76 : index
    %c0_23 = arith.constant 0 : index
    %43 = vector.load %arg4[%c76, %c0_23] : memref<101x768xbf16, #tpu.memory_space<vmem>>, vector<4x384xbf16>
    tpu.vector_store %arg4[%c76, %c0_23], %42 {strides = array<i32>} : memref<101x768xbf16, #tpu.memory_space<vmem>>, vector<4x384xbf16>,
    %44 = vector.extract_strided_slice %3 {offsets = [0, 80], sizes = [4, 384], strides = [1, 1]} : vector<4x512xbf16> to vector<4x384xbf16>
    %c80 = arith.constant 80 : index
    %c0_24 = arith.constant 0 : index
    %45 = vector.load %arg4[%c80, %c0_24] : memref<101x768xbf16, #tpu.memory_space<vmem>>, vector<4x384xbf16>
    tpu.vector_store %arg4[%c80, %c0_24], %44 {strides = array<i32>} : memref<101x768xbf16, #tpu.memory_space<vmem>>, vector<4x384xbf16>,
    %46 = vector.extract_strided_slice %3 {offsets = [0, 81], sizes = [4, 384], strides = [1, 1]} : vector<4x512xbf16> to vector<4x384xbf16>
    %c84 = arith.constant 84 : index
    %c0_25 = arith.constant 0 : index
    %47 = vector.load %arg4[%c84, %c0_25] : memref<101x768xbf16, #tpu.memory_space<vmem>>, vector<4x384xbf16>
    tpu.vector_store %arg4[%c84, %c0_25], %46 {strides = array<i32>} : memref<101x768xbf16, #tpu.memory_space<vmem>>, vector<4x384xbf16>,
    %48 = vector.extract_strided_slice %3 {offsets = [0, 82], sizes = [4, 384], strides = [1, 1]} : vector<4x512xbf16> to vector<4x384xbf16>
    %c88 = arith.constant 88 : index
    %c0_26 = arith.constant 0 : index
    %49 = vector.load %arg4[%c88, %c0_26] : memref<101x768xbf16, #tpu.memory_space<vmem>>, vector<4x384xbf16>
    tpu.vector_store %arg4[%c88, %c0_26], %48 {strides = array<i32>} : memref<101x768xbf16, #tpu.memory_space<vmem>>, vector<4x384xbf16>,
    %50 = vector.extract_strided_slice %3 {offsets = [0, 83], sizes = [4, 384], strides = [1, 1]} : vector<4x512xbf16> to vector<4x384xbf16>
    %c92 = arith.constant 92 : index
    %c0_27 = arith.constant 0 : index
    %51 = vector.load %arg4[%c92, %c0_27] : memref<101x768xbf16, #tpu.memory_space<vmem>>, vector<4x384xbf16>
    tpu.vector_store %arg4[%c92, %c0_27], %50 {strides = array<i32>} : memref<101x768xbf16, #tpu.memory_space<vmem>>, vector<4x384xbf16>,
    %52 = vector.extract_strided_slice %3 {offsets = [0, 84], sizes = [4, 384], strides = [1, 1]} : vector<4x512xbf16> to vector<4x384xbf16>
    %c96 = arith.constant 96 : index
    %c0_28 = arith.constant 0 : index
    %53 = vector.load %arg4[%c96, %c0_28] : memref<101x768xbf16, #tpu.memory_space<vmem>>, vector<4x384xbf16>
    tpu.vector_store %arg4[%c96, %c0_28], %52 {strides = array<i32>} : memref<101x768xbf16, #tpu.memory_space<vmem>>, vector<4x384xbf16>,
    %c1 = arith.constant 1 : index
    %c0_29 = arith.constant 0 : index
    %c0_30 = arith.constant 0 : index
    %54 = vector.load %arg1[%c1, %c0_29, %c0_30] : memref<2x4x512xbf16, #tpu.memory_space<vmem>>, vector<1x4x512xbf16>
    %55 = vector.shape_cast %54 : vector<1x4x512xbf16> to vector<4x512xbf16>
    %56 = vector.extract_strided_slice %55 {offsets = [0, 0], sizes = [4, 384], strides = [1, 1]} : vector<4x512xbf16> to vector<4x384xbf16>
    %c0_31 = arith.constant 0 : index
    %c384 = arith.constant 384 : index
    %57 = vector.load %arg4[%c0_31, %c384] : memref<101x768xbf16, #tpu.memory_space<vmem>>, vector<4x384xbf16>
    tpu.vector_store %arg4[%c0_31, %c384], %56 {strides = array<i32>} : memref<101x768xbf16, #tpu.memory_space<vmem>>, vector<4x384xbf16>,
    %58 = vector.extract_strided_slice %55 {offsets = [0, 1], sizes = [4, 384], strides = [1, 1]} : vector<4x512xbf16> to vector<4x384xbf16>
    %c4_32 = arith.constant 4 : index
    %c384_33 = arith.constant 384 : index
    %59 = vector.load %arg4[%c4_32, %c384_33] : memref<101x768xbf16, #tpu.memory_space<vmem>>, vector<4x384xbf16>
    tpu.vector_store %arg4[%c4_32, %c384_33], %58 {strides = array<i32>} : memref<101x768xbf16, #tpu.memory_space<vmem>>, vector<4x384xbf16>,
    %60 = vector.extract_strided_slice %55 {offsets = [0, 2], sizes = [4, 384], strides = [1, 1]} : vector<4x512xbf16> to vector<4x384xbf16>
    %c8_34 = arith.constant 8 : index
    %c384_35 = arith.constant 384 : index
    %61 = vector.load %arg4[%c8_34, %c384_35] : memref<101x768xbf16, #tpu.memory_space<vmem>>, vector<4x384xbf16>
    tpu.vector_store %arg4[%c8_34, %c384_35], %60 {strides = array<i32>} : memref<101x768xbf16, #tpu.memory_space<vmem>>, vector<4x384xbf16>,
    %62 = vector.extract_strided_slice %55 {offsets = [0, 3], sizes = [4, 384], strides = [1, 1]} : vector<4x512xbf16> to vector<4x384xbf16>
    %c12_36 = arith.constant 12 : index
    %c384_37 = arith.constant 384 : index
    %63 = vector.load %arg4[%c12_36, %c384_37] : memref<101x768xbf16, #tpu.memory_space<vmem>>, vector<4x384xbf16>
    tpu.vector_store %arg4[%c12_36, %c384_37], %62 {strides = array<i32>} : memref<101x768xbf16, #tpu.memory_space<vmem>>, vector<4x384xbf16>,
    %64 = vector.extract_strided_slice %55 {offsets = [0, 4], sizes = [4, 384], strides = [1, 1]} : vector<4x512xbf16> to vector<4x384xbf16>
    %c16_38 = arith.constant 16 : index
    %c384_39 = arith.constant 384 : index
    %65 = vector.load %arg4[%c16_38, %c384_39] : memref<101x768xbf16, #tpu.memory_space<vmem>>, vector<4x384xbf16>
    tpu.vector_store %arg4[%c16_38, %c384_39], %64 {strides = array<i32>} : memref<101x768xbf16, #tpu.memory_space<vmem>>, vector<4x384xbf16>,
    %66 = vector.extract_strided_slice %55 {offsets = [0, 20], sizes = [4, 384], strides = [1, 1]} : vector<4x512xbf16> to vector<4x384xbf16>
    %c20_40 = arith.constant 20 : index
    %c384_41 = arith.constant 384 : index
    %67 = vector.load %arg4[%c20_40, %c384_41] : memref<101x768xbf16, #tpu.memory_space<vmem>>, vector<4x384xbf16>
    tpu.vector_store %arg4[%c20_40, %c384_41], %66 {strides = array<i32>} : memref<101x768xbf16, #tpu.memory_space<vmem>>, vector<4x384xbf16>,
    %68 = vector.extract_strided_slice %55 {offsets = [0, 21], sizes = [4, 384], strides = [1, 1]} : vector<4x512xbf16> to vector<4x384xbf16>
    %c24_42 = arith.constant 24 : index
    %c384_43 = arith.constant 384 : index
    %69 = vector.load %arg4[%c24_42, %c384_43] : memref<101x768xbf16, #tpu.memory_space<vmem>>, vector<4x384xbf16>
    tpu.vector_store %arg4[%c24_42, %c384_43], %68 {strides = array<i32>} : memref<101x768xbf16, #tpu.memory_space<vmem>>, vector<4x384xbf16>,
    %70 = vector.extract_strided_slice %55 {offsets = [0, 22], sizes = [4, 384], strides = [1, 1]} : vector<4x512xbf16> to vector<4x384xbf16>
    %c28_44 = arith.constant 28 : index
    %c384_45 = arith.constant 384 : index
    %71 = vector.load %arg4[%c28_44, %c384_45] : memref<101x768xbf16, #tpu.memory_space<vmem>>, vector<4x384xbf16>
    tpu.vector_store %arg4[%c28_44, %c384_45], %70 {strides = array<i32>} : memref<101x768xbf16, #tpu.memory_space<vmem>>, vector<4x384xbf16>,
    %72 = vector.extract_strided_slice %55 {offsets = [0, 23], sizes = [4, 384], strides = [1, 1]} : vector<4x512xbf16> to vector<4x384xbf16>
    %c32_46 = arith.constant 32 : index
    %c384_47 = arith.constant 384 : index
    %73 = vector.load %arg4[%c32_46, %c384_47] : memref<101x768xbf16, #tpu.memory_space<vmem>>, vector<4x384xbf16>
    tpu.vector_store %arg4[%c32_46, %c384_47], %72 {strides = array<i32>} : memref<101x768xbf16, #tpu.memory_space<vmem>>, vector<4x384xbf16>,
    %74 = vector.extract_strided_slice %55 {offsets = [0, 24], sizes = [4, 384], strides = [1, 1]} : vector<4x512xbf16> to vector<4x384xbf16>
    %c36_48 = arith.constant 36 : index
    %c384_49 = arith.constant 384 : index
    %75 = vector.load %arg4[%c36_48, %c384_49] : memref<101x768xbf16, #tpu.memory_space<vmem>>, vector<4x384xbf16>
    tpu.vector_store %arg4[%c36_48, %c384_49], %74 {strides = array<i32>} : memref<101x768xbf16, #tpu.memory_space<vmem>>, vector<4x384xbf16>,
    %76 = vector.extract_strided_slice %55 {offsets = [0, 40], sizes = [4, 384], strides = [1, 1]} : vector<4x512xbf16> to vector<4x384xbf16>
    %c40_50 = arith.constant 40 : index
    %c384_51 = arith.constant 384 : index
    %77 = vector.load %arg4[%c40_50, %c384_51] : memref<101x768xbf16, #tpu.memory_space<vmem>>, vector<4x384xbf16>
    tpu.vector_store %arg4[%c40_50, %c384_51], %76 {strides = array<i32>} : memref<101x768xbf16, #tpu.memory_space<vmem>>, vector<4x384xbf16>,
    %78 = vector.extract_strided_slice %55 {offsets = [0, 41], sizes = [4, 384], strides = [1, 1]} : vector<4x512xbf16> to vector<4x384xbf16>
    %c44_52 = arith.constant 44 : index
    %c384_53 = arith.constant 384 : index
    %79 = vector.load %arg4[%c44_52, %c384_53] : memref<101x768xbf16, #tpu.memory_space<vmem>>, vector<4x384xbf16>
    tpu.vector_store %arg4[%c44_52, %c384_53], %78 {strides = array<i32>} : memref<101x768xbf16, #tpu.memory_space<vmem>>, vector<4x384xbf16>,
    %80 = vector.extract_strided_slice %55 {offsets = [0, 42], sizes = [4, 384], strides = [1, 1]} : vector<4x512xbf16> to vector<4x384xbf16>
    %c48_54 = arith.constant 48 : index
    %c384_55 = arith.constant 384 : index
    %81 = vector.load %arg4[%c48_54, %c384_55] : memref<101x768xbf16, #tpu.memory_space<vmem>>, vector<4x384xbf16>
    tpu.vector_store %arg4[%c48_54, %c384_55], %80 {strides = array<i32>} : memref<101x768xbf16, #tpu.memory_space<vmem>>, vector<4x384xbf16>,
    %82 = vector.extract_strided_slice %55 {offsets = [0, 43], sizes = [4, 384], strides = [1, 1]} : vector<4x512xbf16> to vector<4x384xbf16>
    %c52_56 = arith.constant 52 : index
    %c384_57 = arith.constant 384 : index
    %83 = vector.load %arg4[%c52_56, %c384_57] : memref<101x768xbf16, #tpu.memory_space<vmem>>, vector<4x384xbf16>
    tpu.vector_store %arg4[%c52_56, %c384_57], %82 {strides = array<i32>} : memref<101x768xbf16, #tpu.memory_space<vmem>>, vector<4x384xbf16>,
    %84 = vector.extract_strided_slice %55 {offsets = [0, 44], sizes = [4, 384], strides = [1, 1]} : vector<4x512xbf16> to vector<4x384xbf16>
    %c56_58 = arith.constant 56 : index
    %c384_59 = arith.constant 384 : index
    %85 = vector.load %arg4[%c56_58, %c384_59] : memref<101x768xbf16, #tpu.memory_space<vmem>>, vector<4x384xbf16>
    tpu.vector_store %arg4[%c56_58, %c384_59], %84 {strides = array<i32>} : memref<101x768xbf16, #tpu.memory_space<vmem>>, vector<4x384xbf16>,
    %86 = vector.extract_strided_slice %55 {offsets = [0, 60], sizes = [4, 384], strides = [1, 1]} : vector<4x512xbf16> to vector<4x384xbf16>
    %c60_60 = arith.constant 60 : index
    %c384_61 = arith.constant 384 : index
    %87 = vector.load %arg4[%c60_60, %c384_61] : memref<101x768xbf16, #tpu.memory_space<vmem>>, vector<4x384xbf16>
    tpu.vector_store %arg4[%c60_60, %c384_61], %86 {strides = array<i32>} : memref<101x768xbf16, #tpu.memory_space<vmem>>, vector<4x384xbf16>,
    %88 = vector.extract_strided_slice %55 {offsets = [0, 61], sizes = [4, 384], strides = [1, 1]} : vector<4x512xbf16> to vector<4x384xbf16>
    %c64_62 = arith.constant 64 : index
    %c384_63 = arith.constant 384 : index
    %89 = vector.load %arg4[%c64_62, %c384_63] : memref<101x768xbf16, #tpu.memory_space<vmem>>, vector<4x384xbf16>
    tpu.vector_store %arg4[%c64_62, %c384_63], %88 {strides = array<i32>} : memref<101x768xbf16, #tpu.memory_space<vmem>>, vector<4x384xbf16>,
    %90 = vector.extract_strided_slice %55 {offsets = [0, 62], sizes = [4, 384], strides = [1, 1]} : vector<4x512xbf16> to vector<4x384xbf16>
    %c68_64 = arith.constant 68 : index
    %c384_65 = arith.constant 384 : index
    %91 = vector.load %arg4[%c68_64, %c384_65] : memref<101x768xbf16, #tpu.memory_space<vmem>>, vector<4x384xbf16>
    tpu.vector_store %arg4[%c68_64, %c384_65], %90 {strides = array<i32>} : memref<101x768xbf16, #tpu.memory_space<vmem>>, vector<4x384xbf16>,
    %92 = vector.extract_strided_slice %55 {offsets = [0, 63], sizes = [4, 384], strides = [1, 1]} : vector<4x512xbf16> to vector<4x384xbf16>
    %c72_66 = arith.constant 72 : index
    %c384_67 = arith.constant 384 : index
    %93 = vector.load %arg4[%c72_66, %c384_67] : memref<101x768xbf16, #tpu.memory_space<vmem>>, vector<4x384xbf16>
    tpu.vector_store %arg4[%c72_66, %c384_67], %92 {strides = array<i32>} : memref<101x768xbf16, #tpu.memory_space<vmem>>, vector<4x384xbf16>,
    %94 = vector.extract_strided_slice %55 {offsets = [0, 64], sizes = [4, 384], strides = [1, 1]} : vector<4x512xbf16> to vector<4x384xbf16>
    %c76_68 = arith.constant 76 : index
    %c384_69 = arith.constant 384 : index
    %95 = vector.load %arg4[%c76_68, %c384_69] : memref<101x768xbf16, #tpu.memory_space<vmem>>, vector<4x384xbf16>
    tpu.vector_store %arg4[%c76_68, %c384_69], %94 {strides = array<i32>} : memref<101x768xbf16, #tpu.memory_space<vmem>>, vector<4x384xbf16>,
    %96 = vector.extract_strided_slice %55 {offsets = [0, 80], sizes = [4, 384], strides = [1, 1]} : vector<4x512xbf16> to vector<4x384xbf16>
    %c80_70 = arith.constant 80 : index
    %c384_71 = arith.constant 384 : index
    %97 = vector.load %arg4[%c80_70, %c384_71] : memref<101x768xbf16, #tpu.memory_space<vmem>>, vector<4x384xbf16>
    tpu.vector_store %arg4[%c80_70, %c384_71], %96 {strides = array<i32>} : memref<101x768xbf16, #tpu.memory_space<vmem>>, vector<4x384xbf16>,
    %98 = vector.extract_strided_slice %55 {offsets = [0, 81], sizes = [4, 384], strides = [1, 1]} : vector<4x512xbf16> to vector<4x384xbf16>
    %c84_72 = arith.constant 84 : index
    %c384_73 = arith.constant 384 : index
    %99 = vector.load %arg4[%c84_72, %c384_73] : memref<101x768xbf16, #tpu.memory_space<vmem>>, vector<4x384xbf16>
    tpu.vector_store %arg4[%c84_72, %c384_73], %98 {strides = array<i32>} : memref<101x768xbf16, #tpu.memory_space<vmem>>, vector<4x384xbf16>,
    %100 = vector.extract_strided_slice %55 {offsets = [0, 82], sizes = [4, 384], strides = [1, 1]} : vector<4x512xbf16> to vector<4x384xbf16>
    %c88_74 = arith.constant 88 : index
    %c384_75 = arith.constant 384 : index
    %101 = vector.load %arg4[%c88_74, %c384_75] : memref<101x768xbf16, #tpu.memory_space<vmem>>, vector<4x384xbf16>
    tpu.vector_store %arg4[%c88_74, %c384_75], %100 {strides = array<i32>} : memref<101x768xbf16, #tpu.memory_space<vmem>>, vector<4x384xbf16>,
    %102 = vector.extract_strided_slice %55 {offsets = [0, 83], sizes = [4, 384], strides = [1, 1]} : vector<4x512xbf16> to vector<4x384xbf16>
    %c92_76 = arith.constant 92 : index
    %c384_77 = arith.constant 384 : index
    %103 = vector.load %arg4[%c92_76, %c384_77] : memref<101x768xbf16, #tpu.memory_space<vmem>>, vector<4x384xbf16>
    tpu.vector_store %arg4[%c92_76, %c384_77], %102 {strides = array<i32>} : memref<101x768xbf16, #tpu.memory_space<vmem>>, vector<4x384xbf16>,
    %104 = vector.extract_strided_slice %55 {offsets = [0, 84], sizes = [4, 384], strides = [1, 1]} : vector<4x512xbf16> to vector<4x384xbf16>
    %c96_78 = arith.constant 96 : index
    %c384_79 = arith.constant 384 : index
    %105 = vector.load %arg4[%c96_78, %c384_79] : memref<101x768xbf16, #tpu.memory_space<vmem>>, vector<4x384xbf16>
    tpu.vector_store %arg4[%c96_78, %c384_79], %104 {strides = array<i32>} : memref<101x768xbf16, #tpu.memory_space<vmem>>, vector<4x384xbf16>,
    %c0_80 = arith.constant 0 : index
    %c0_81 = arith.constant 0 : index
    %106 = vector.load %arg2[%c0_80, %c0_81] : memref<16x101xbf16, #tpu.memory_space<vmem>>, vector<16x101xbf16>
    %c0_82 = arith.constant 0 : index
    %c0_83 = arith.constant 0 : index
    %107 = vector.load %arg4[%c0_82, %c0_83] : memref<101x768xbf16, #tpu.memory_space<vmem>>, vector<101x768xbf16>
    %cst_84 = arith.constant dense<0.000000e+00> : vector<16x768xf32>
    %108 = tpu.matmul %106, %107, %cst_84 {dimension_numbers = #tpu.dot_dimension_numbers<[1], [0], [0], [1], [0, 0, 1, 1], [], []>} : vector<16x101xbf16>, vector<101x768xbf16>, vector<16x768xf32> -> vector<16x768xf32>
    %109 = vector.extract_strided_slice %108 {offsets = [0, 0], sizes = [8, 768], strides = [1, 1]} : vector<16x768xf32> to vector<8x768xf32>
    %110 = vector.extract_strided_slice %108 {offsets = [8, 0], sizes = [8, 768], strides = [1, 1]} : vector<16x768xf32> to vector<8x768xf32>
    %111 = arith.maximumf %109, %110 : vector<8x768xf32>
    %112 = vector.extract_strided_slice %111 {offsets = [0, 0], sizes = [8, 384], strides = [1, 1]} : vector<8x768xf32> to vector<8x384xf32>
    %c0_85 = arith.constant 0 : index
    %c0_86 = arith.constant 0 : index
    %c0_87 = arith.constant 0 : index
    %113 = vector.load %arg3[%c0_85, %c0_86, %c0_87] : memref<2x8x384xf32, #tpu.memory_space<vmem>>, vector<1x8x384xf32>
    %114 = vector.shape_cast %113 : vector<1x8x384xf32> to vector<8x384xf32>
    %115 = vector.shape_cast %112 : vector<8x384xf32> to vector<1x8x384xf32>
    tpu.vector_store %arg3[%c0_85, %c0_86, %c0_87], %115 {strides = array<i32>} : memref<2x8x384xf32, #tpu.memory_space<vmem>>, vector<1x8x384xf32>,
    %116 = vector.extract_strided_slice %111 {offsets = [0, 384], sizes = [8, 384], strides = [1, 1]} : vector<8x768xf32> to vector<8x384xf32>
    %c1_88 = arith.constant 1 : index
    %c0_89 = arith.constant 0 : index
    %c0_90 = arith.constant 0 : index
    %117 = vector.load %arg3[%c1_88, %c0_89, %c0_90] : memref<2x8x384xf32, #tpu.memory_space<vmem>>, vector<1x8x384xf32>
    %118 = vector.shape_cast %117 : vector<1x8x384xf32> to vector<8x384xf32>
    %119 = vector.shape_cast %116 : vector<8x384xf32> to vector<1x8x384xf32>
    tpu.vector_store %arg3[%c1_88, %c0_89, %c0_90], %119 {strides = array<i32>} : memref<2x8x384xf32, #tpu.memory_space<vmem>>, vector<1x8x384xf32>,
    return
  }
  func.func @transform_0(%arg0: i32) -> (i32, i32, i32) {
    %c0_i32 = arith.constant 0 : i32
    %c0_i32_0 = arith.constant 0 : i32
    %c0_i32_1 = arith.constant 0 : i32
    return %arg0, %c0_i32, %c0_i32_0 : i32, i32, i32
  }
  func.func @transform_1(%arg0: i32) -> (i32, i32) {
    %c0_i32 = arith.constant 0 : i32
    %c0_i32_0 = arith.constant 0 : i32
    %c0_i32_1 = arith.constant 0 : i32
    return %c0_i32, %c0_i32_0 : i32, i32
  }
  func.func @transform_2(%arg0: i32) -> (i32, i32, i32) {
    %c0_i32 = arith.constant 0 : i32
    %c0_i32_0 = arith.constant 0 : i32
    %c0_i32_1 = arith.constant 0 : i32
    return %arg0, %c0_i32, %c0_i32_0 : i32, i32, i32
  }
}

</mosaic_0001>

<llo_original>
// kernel: inception_mfm_forward.1
$region0: #{inception_mfm_forward.1}
  #allocation0 [shape = 'u32[]', space=smem, size = 0x4, offset = 0x4, fixed_abs, tag = 'smem constant byte address 0x4 - core index']
  #allocation1 [shape = 'u32[144,128]{1,0:T(1,128)}', space=vmem, size = 0x12000, scoped, tag = 'internal scratch']
  #allocation2 [shape = 'bf16[101,768]{1,0:T(8,128)(2,1)}', space=vmem, size = 0x27000, scoped, tag = 'scratch operand']
  %s0 = inlined_call_operand.vmem [shape: bf16[2,4,512], index: 0, kind: input, shape index: {}]
  %s1 = inlined_call_operand.vmem [shape: bf16[16,101], index: 1, kind: input, shape index: {}]
  %s2 = inlined_call_operand.vmem [shape: f32[2,8,384], index: 2, kind: output, shape index: {}]
  %s3 = sld [smem:[#allocation0]]
  $region18: #{inception_mfm_forward.1} parent=0
    _
  %s5 = ssub.s32 1, %s3
  %s6 = scalar_select 0, %s5, %s3
  // Predicated region
  $region2: #{inception_mfm_forward.1} parent=0 // pred_check
    _
  $region3: #{inception_mfm_forward.1} parent=0 // pred_check_branch
    %8 = sbr.rel (0) target = $region5
  $region4: #{inception_mfm_forward.1} parent=0 // pred_region
    _
  $region5: #{inception_mfm_forward.1} parent=0 // pred_fallthru
    _
  // Predicated region
  $region6: #{inception_mfm_forward.1} parent=0 // pred_check
    _
  $region7: #{inception_mfm_forward.1} parent=0 // pred_check_branch
    %10 = sbr.rel (0) target = $region9
  $region8: #{inception_mfm_forward.1} parent=0 // pred_region
    _
  $region9: #{inception_mfm_forward.1} parent=0 // pred_fallthru
    _
  %vm13 = vcmask 1042434
  %vm14 = vsmask.f32 2304
  %vm15 = vmand %vm13, %vm14
  %vm16 = vcmask 1046534
  %vm17 = vsmask.f32 6400
  %vm18 = vmand %vm16, %vm17
  %vm19 = vmor %vm18, %vm15
  %v20 = vld [vmem:[#allocation2 + $0x120] sm:$0x44]
  %v21 = vsel %vm19, 1065369472, %v20
  %22 = vst [vmem:[#allocation2 + $0x120] sm:$0x44] %v21
  %v23 = vld [vmem:[#allocation2 + $0x128] sm:$0x44]
  %v24 = vsel %vm19, 1065369472, %v23
  %25 = vst [vmem:[#allocation2 + $0x128] sm:$0x44] %v24
  %v26 = vld [vmem:[#allocation2 + $0x130] sm:$0x44]
  %v27 = vsel %vm19, 1065369472, %v26
  %28 = vst [vmem:[#allocation2 + $0x130] sm:$0x44] %v27
  %v29 = vld [vmem:[%s0] sm:$0xff]
  %v31 = vcombine.high %v29, %v29
  %v33 = vunpack.c.l.s4 1983009808
  %v34 = vunpack.c.0.s8 %v33
  %v35 = vlaneseq
  %v36 = vshrl.u32 %v35, 7
  %v37 = vsub.s32 %v34, %v36
  %v38 = vrot.slane %v29, %v37
  %v40 = vunpack.c.l.s4 1983009808
  %v41 = vunpack.c.0.s8 %v40
  %v42 = vlaneseq
  %v43 = vshrl.u32 %v42, 7
  %v44 = vsub.s32 %v41, %v43
  %v45 = vrot.slane %v31, %v44
  %48 = vst [vmem:[#allocation2] sm:$0x33] %v38
  %49 = vst [vmem:[#allocation2 + $0x8] sm:$0x3] %v45
  %v50 = vcombine.low %v29, %v29
  %v52 = vunpack.c.l.s4 1983009808
  %v53 = vunpack.c.0.s8 %v52
  %v54 = vlaneseq
  %v55 = vshrl.u32 %v54, 7
  %v56 = vsub.s32 %v53, %v55
  %v57 = vrot.slane %v50, %v56
  %58 = vrot.lane.b32.xlu0 %v57, 127
  %v59 = vpop.permute.xlu0 %58
  %60 = vrot.lane.b32.xlu0 %v38, 127
  %v61 = vpop.permute.xlu0 %60
  %v62 = vrot.slane %v59, 4
  %v63 = vrot.slane %v61, 4
  %vm64 = vcmask 1043456
  %v65 = vsel %vm64, %v62, %v63
  %vm66 = vcmask 1039360
  %v67 = vsel %vm66, %v59, %v65
  %v68 = vsel %vm66, %v61, %v63
  %71 = vst [vmem:[#allocation2] sm:$0xcc] %v67
  %72 = vst [vmem:[#allocation2 + $0x8] sm:$0xc] %v68
  %73 = vrot.lane.b32.xlu0 %v38, 126
  %v74 = vpop.permute.xlu0 %73
  %75 = vrot.lane.b32.xlu0 %v45, 126
  %v76 = vpop.permute.xlu0 %75
  %v77 = vrot.slane %v74, 4
  %v78 = vrot.slane %v76, 4
  %v79 = vsel %vm64, %v77, %v78
  %vm80 = vcmask 1031168
  %v81 = vsel %vm80, %v74, %v79
  %v82 = vsel %vm80, %v76, %v78
  %85 = vst [vmem:[#allocation2 + $0x18] sm:$0x33] %v81
  %86 = vst [vmem:[#allocation2 + $0x20] sm:$0x3] %v82
  %87 = vrot.lane.b32.xlu0 %v57, 125
  %v88 = vpop.permute.xlu0 %87
  %89 = vrot.lane.b32.xlu0 %v38, 125
  %v90 = vpop.permute.xlu0 %89
  %v91 = vrot.slane %v88, 4
  %v92 = vrot.slane %v90, 4
  %v93 = vsel %vm64, %v91, %v92
  %vm94 = vcmask 1022976
  %v95 = vsel %vm94, %v88, %v93
  %v96 = vsel %vm94, %v90, %v92
  %99 = vst [vmem:[#allocation2 + $0x18] sm:$0xcc] %v95
  %100 = vst [vmem:[#allocation2 + $0x20] sm:$0xc] %v96
  %101 = vrot.lane.b32.xlu0 %v38, 124
  %v102 = vpop.permute.xlu0 %101
  %103 = vrot.lane.b32.xlu0 %v45, 124
  %v104 = vpop.permute.xlu0 %103
  %v105 = vrot.slane %v102, 4
  %v106 = vrot.slane %v104, 4
  %v107 = vsel %vm64, %v105, %v106
  %vm108 = vcmask 1014784
  %v109 = vsel %vm108, %v102, %v107
  %v110 = vsel %vm108, %v104, %v106
  %113 = vst [vmem:[#allocation2 + $0x30] sm:$0x33] %v109
  %114 = vst [vmem:[#allocation2 + $0x38] sm:$0x3] %v110
  %115 = vrot.lane.b32.xlu0 %v57, 108
  %v116 = vpop.permute.xlu0 %115
  %117 = vrot.lane.b32.xlu0 %v38, 108
  %v118 = vpop.permute.xlu0 %117
  %v119 = vrot.slane %v116, 4
  %v120 = vrot.slane %v118, 4
  %v121 = vsel %vm64, %v119, %v120
  %vm122 = vcmask 883712
  %v123 = vsel %vm122, %v116, %v121
  %v124 = vsel %vm122, %v118, %v120
  %127 = vst [vmem:[#allocation2 + $0x30] sm:$0xcc] %v123
  %128 = vst [vmem:[#allocation2 + $0x38] sm:$0xc] %v124
  %129 = vrot.lane.b32.xlu0 %v38, 107
  %v130 = vpop.permute.xlu0 %129
  %131 = vrot.lane.b32.xlu0 %v45, 107
  %v132 = vpop.permute.xlu0 %131
  %v133 = vrot.slane %v130, 4
  %v134 = vrot.slane %v132, 4
  %v135 = vsel %vm64, %v133, %v134
  %vm136 = vcmask 875520
  %v137 = vsel %vm136, %v130, %v135
  %v138 = vsel %vm136, %v132, %v134
  %141 = vst [vmem:[#allocation2 + $0x48] sm:$0x33] %v137
  %142 = vst [vmem:[#allocation2 + $0x50] sm:$0x3] %v138
  %143 = vrot.lane.b32.xlu0 %v57, 106
  %v144 = vpop.permute.xlu0 %143
  %145 = vrot.lane.b32.xlu0 %v38, 106
  %v146 = vpop.permute.xlu0 %145
  %v147 = vrot.slane %v144, 4
  %v148 = vrot.slane %v146, 4
  %v149 = vsel %vm64, %v147, %v148
  %vm150 = vcmask 867328
  %v151 = vsel %vm150, %v144, %v149
  %v152 = vsel %vm150, %v146, %v148
  %155 = vst [vmem:[#allocation2 + $0x48] sm:$0xcc] %v151
  %156 = vst [vmem:[#allocation2 + $0x50] sm:$0xc] %v152
  %157 = vrot.lane.b32.xlu0 %v38, 105
  %v158 = vpop.permute.xlu0 %157
  %159 = vrot.lane.b32.xlu0 %v45, 105
  %v160 = vpop.permute.xlu0 %159
  %v161 = vrot.slane %v158, 4
  %v162 = vrot.slane %v160, 4
  %v163 = vsel %vm64, %v161, %v162
  %vm164 = vcmask 859136
  %v165 = vsel %vm164, %v158, %v163
  %v166 = vsel %vm164, %v160, %v162
  %169 = vst [vmem:[#allocation2 + $0x60] sm:$0x33] %v165
  %170 = vst [vmem:[#allocation2 + $0x68] sm:$0x3] %v166
  %171 = vrot.lane.b32.xlu0 %v57, 104
  %v172 = vpop.permute.xlu0 %171
  %173 = vrot.lane.b32.xlu0 %v38, 104
  %v174 = vpop.permute.xlu0 %173
  %v175 = vrot.slane %v172, 4
  %v176 = vrot.slane %v174, 4
  %v177 = vsel %vm64, %v175, %v176
  %vm178 = vcmask 850944
  %v179 = vsel %vm178, %v172, %v177
  %v180 = vsel %vm178, %v174, %v176
  %183 = vst [vmem:[#allocation2 + $0x60] sm:$0xcc] %v179
  %184 = vst [vmem:[#allocation2 + $0x68] sm:$0xc] %v180
  %185 = vrot.lane.b32.xlu0 %v38, 88
  %v186 = vpop.permute.xlu0 %185
  %187 = vrot.lane.b32.xlu0 %v45, 88
  %v188 = vpop.permute.xlu0 %187
  %v189 = vrot.slane %v186, 4
  %v190 = vrot.slane %v188, 4
  %v191 = vsel %vm64, %v189, %v190
  %vm192 = vcmask 719872
  %v193 = vsel %vm192, %v186, %v191
  %v194 = vsel %vm192, %v188, %v190
  %197 = vst [vmem:[#allocation2 + $0x78] sm:$0x33] %v193
  %198 = vst [vmem:[#allocation2 + $0x80] sm:$0x3] %v194
  %199 = vrot.lane.b32.xlu0 %v57, 87
  %v200 = vpop.permute.xlu0 %199
  %201 = vrot.lane.b32.xlu0 %v38, 87
  %v202 = vpop.permute.xlu0 %201
  %v203 = vrot.slane %v200, 4
  %v204 = vrot.slane %v202, 4
  %v205 = vsel %vm64, %v203, %v204
  %vm206 = vcmask 711680
  %v207 = vsel %vm206, %v200, %v205
  %v208 = vsel %vm206, %v202, %v204
  %211 = vst [vmem:[#allocation2 + $0x78] sm:$0xcc] %v207
  %212 = vst [vmem:[#allocation2 + $0x80] sm:$0xc] %v208
  %213 = vrot.lane.b32.xlu0 %v38, 86
  %v214 = vpop.permute.xlu0 %213
  %215 = vrot.lane.b32.xlu0 %v45, 86
  %v216 = vpop.permute.xlu0 %215
  %v217 = vrot.slane %v214, 4
  %v218 = vrot.slane %v216, 4
  %v219 = vsel %vm64, %v217, %v218
  %vm220 = vcmask 703488
  %v221 = vsel %vm220, %v214, %v219
  %v222 = vsel %vm220, %v216, %v218
  %225 = vst [vmem:[#allocation2 + $0x90] sm:$0x33] %v221
  %226 = vst [vmem:[#allocation2 + $0x98] sm:$0x3] %v222
  %227 = vrot.lane.b32.xlu0 %v57, 85
  %v228 = vpop.permute.xlu0 %227
  %229 = vrot.lane.b32.xlu0 %v38, 85
  %v230 = vpop.permute.xlu0 %229
  %v231 = vrot.slane %v228, 4
  %v232 = vrot.slane %v230, 4
  %v233 = vsel %vm64, %v231, %v232
  %vm234 = vcmask 695296
  %v235 = vsel %vm234, %v228, %v233
  %v236 = vsel %vm234, %v230, %v232
  %239 = vst [vmem:[#allocation2 + $0x90] sm:$0xcc] %v235
  %240 = vst [vmem:[#allocation2 + $0x98] sm:$0xc] %v236
  %241 = vrot.lane.b32.xlu0 %v38, 84
  %v242 = vpop.permute.xlu0 %241
  %243 = vrot.lane.b32.xlu0 %v45, 84
  %v244 = vpop.permute.xlu0 %243
  %v245 = vrot.slane %v242, 4
  %v246 = vrot.slane %v244, 4
  %v247 = vsel %vm64, %v245, %v246
  %vm248 = vcmask 687104
  %v249 = vsel %vm248, %v242, %v247
  %v250 = vsel %vm248, %v244, %v246
  %253 = vst [vmem:[#allocation2 + $0xa8] sm:$0x33] %v249
  %254 = vst [vmem:[#allocation2 + $0xb0] sm:$0x3] %v250
  %255 = vrot.lane.b32.xlu0 %v57, 68
  %v256 = vpop.permute.xlu0 %255
  %257 = vrot.lane.b32.xlu0 %v38, 68
  %v258 = vpop.permute.xlu0 %257
  %v259 = vrot.slane %v256, 4
  %v260 = vrot.slane %v258, 4
  %v261 = vsel %vm64, %v259, %v260
  %vm262 = vcmask 556032
  %v263 = vsel %vm262, %v256, %v261
  %v264 = vsel %vm262, %v258, %v260
  %267 = vst [vmem:[#allocation2 + $0xa8] sm:$0xcc] %v263
  %268 = vst [vmem:[#allocation2 + $0xb0] sm:$0xc] %v264
  %269 = vrot.lane.b32.xlu0 %v38, 67
  %v270 = vpop.permute.xlu0 %269
  %271 = vrot.lane.b32.xlu0 %v45, 67
  %v272 = vpop.permute.xlu0 %271
  %v273 = vrot.slane %v270, 4
  %v274 = vrot.slane %v272, 4
  %v275 = vsel %vm64, %v273, %v274
  %vm276 = vcmask 547840
  %v277 = vsel %vm276, %v270, %v275
  %v278 = vsel %vm276, %v272, %v274
  %281 = vst [vmem:[#allocation2 + $0xc0] sm:$0x33] %v277
  %282 = vst [vmem:[#allocation2 + $0xc8] sm:$0x3] %v278
  %283 = vrot.lane.b32.xlu0 %v57, 66
  %v284 = vpop.permute.xlu0 %283
  %285 = vrot.lane.b32.xlu0 %v38, 66
  %v286 = vpop.permute.xlu0 %285
  %v287 = vrot.slane %v284, 4
  %v288 = vrot.slane %v286, 4
  %v289 = vsel %vm64, %v287, %v288
  %vm290 = vcmask 539648
  %v291 = vsel %vm290, %v284, %v289
  %v292 = vsel %vm290, %v286, %v288
  %295 = vst [vmem:[#allocation2 + $0xc0] sm:$0xcc] %v291
  %296 = vst [vmem:[#allocation2 + $0xc8] sm:$0xc] %v292
  %297 = vrot.lane.b32.xlu0 %v38, 65
  %v298 = vpop.permute.xlu0 %297
  %299 = vrot.lane.b32.xlu0 %v45, 65
  %v300 = vpop.permute.xlu0 %299
  %v301 = vrot.slane %v298, 4
  %v302 = vrot.slane %v300, 4
  %v303 = vsel %vm64, %v301, %v302
  %vm304 = vcmask 531456
  %v305 = vsel %vm304, %v298, %v303
  %v306 = vsel %vm304, %v300, %v302
  %309 = vst [vmem:[#allocation2 + $0xd8] sm:$0x33] %v305
  %310 = vst [vmem:[#allocation2 + $0xe0] sm:$0x3] %v306
  %311 = vrot.lane.b32.xlu0 %v57, 64
  %v312 = vpop.permute.xlu0 %311
  %313 = vrot.lane.b32.xlu0 %v38, 64
  %v314 = vpop.permute.xlu0 %313
  %v315 = vrot.slane %v312, 4
  %v316 = vrot.slane %v314, 4
  %v317 = vsel %vm64, %v315, %v316
  %vm318 = vcmask 523264
  %v319 = vsel %vm318, %v312, %v317
  %v320 = vsel %vm318, %v314, %v316
  %323 = vst [vmem:[#allocation2 + $0xd8] sm:$0xcc] %v319
  %324 = vst [vmem:[#allocation2 + $0xe0] sm:$0xc] %v320
  %325 = vrot.lane.b32.xlu0 %v38, 48
  %v326 = vpop.permute.xlu0 %325
  %327 = vrot.lane.b32.xlu0 %v45, 48
  %v328 = vpop.permute.xlu0 %327
  %v329 = vrot.slane %v326, 4
  %v330 = vrot.slane %v328, 4
  %v331 = vsel %vm64, %v329, %v330
  %vm332 = vcmask 392192
  %v333 = vsel %vm332, %v326, %v331
  %v334 = vsel %vm332, %v328, %v330
  %337 = vst [vmem:[#allocation2 + $0xf0] sm:$0x33] %v333
  %338 = vst [vmem:[#allocation2 + $0xf8] sm:$0x3] %v334
  %339 = vrot.lane.b32.xlu0 %v57, 47
  %v340 = vpop.permute.xlu0 %339
  %341 = vrot.lane.b32.xlu0 %v38, 47
  %v342 = vpop.permute.xlu0 %341
  %v343 = vrot.slane %v340, 4
  %v344 = vrot.slane %v342, 4
  %v345 = vsel %vm64, %v343, %v344
  %vm346 = vcmask 384000
  %v347 = vsel %vm346, %v340, %v345
  %v348 = vsel %vm346, %v342, %v344
  %351 = vst [vmem:[#allocation2 + $0xf0] sm:$0xcc] %v347
  %352 = vst [vmem:[#allocation2 + $0xf8] sm:$0xc] %v348
  %353 = vrot.lane.b32.xlu0 %v38, 46
  %v354 = vpop.permute.xlu0 %353
  %355 = vrot.lane.b32.xlu0 %v45, 46
  %v356 = vpop.permute.xlu0 %355
  %v357 = vrot.slane %v354, 4
  %v358 = vrot.slane %v356, 4
  %v359 = vsel %vm64, %v357, %v358
  %vm360 = vcmask 375808
  %v361 = vsel %vm360, %v354, %v359
  %v362 = vsel %vm360, %v356, %v358
  %365 = vst [vmem:[#allocation2 + $0x108] sm:$0x33] %v361
  %366 = vst [vmem:[#allocation2 + $0x110] sm:$0x3] %v362
  %367 = vrot.lane.b32.xlu0 %v57, 45
  %v368 = vpop.permute.xlu0 %367
  %369 = vrot.lane.b32.xlu0 %v38, 45
  %v370 = vpop.permute.xlu0 %369
  %v371 = vrot.slane %v368, 4
  %v372 = vrot.slane %v370, 4
  %v373 = vsel %vm64, %v371, %v372
  %vm374 = vcmask 367616
  %v375 = vsel %vm374, %v368, %v373
  %v376 = vsel %vm374, %v370, %v372
  %379 = vst [vmem:[#allocation2 + $0x108] sm:$0xcc] %v375
  %380 = vst [vmem:[#allocation2 + $0x110] sm:$0xc] %v376
  %381 = vrot.lane.b32.xlu0 %v38, 44
  %v382 = vpop.permute.xlu0 %381
  %383 = vrot.lane.b32.xlu0 %v45, 44
  %v384 = vpop.permute.xlu0 %383
  %v385 = vrot.slane %v382, 4
  %v386 = vrot.slane %v384, 4
  %v387 = vsel %vm64, %v385, %v386
  %vm388 = vcmask 359424
  %v389 = vsel %vm388, %v382, %v387
  %v390 = vsel %vm388, %v384, %v386
  %393 = vst [vmem:[#allocation2 + $0x120] sm:$0x33] %v389
  %394 = vst [vmem:[#allocation2 + $0x128] sm:$0x3] %v390
  %s395 = scalar_lea.vmem %s0, 8
  %v396 = vld [vmem:[%s395] sm:$0xff]
  %v398 = vcombine.high %v396, %v396
  %v400 = vunpack.c.l.s4 1983009808
  %v401 = vunpack.c.0.s8 %v400
  %v402 = vlaneseq
  %v403 = vshrl.u32 %v402, 7
  %v404 = vsub.s32 %v401, %v403
  %v405 = vrot.slane %v396, %v404
  %v407 = vunpack.c.l.s4 1983009808
  %v408 = vunpack.c.0.s8 %v407
  %v409 = vlaneseq
  %v410 = vshrl.u32 %v409, 7
  %v411 = vsub.s32 %v408, %v410
  %v412 = vrot.slane %v398, %v411
  %415 = vst [vmem:[#allocation2 + $0xc] sm:$0x33] %v405
  %416 = vst [vmem:[#allocation2 + $0x14] sm:$0x3] %v412
  %v417 = vcombine.low %v396, %v396
  %v419 = vunpack.c.l.s4 1983009808
  %v420 = vunpack.c.0.s8 %v419
  %v421 = vlaneseq
  %v422 = vshrl.u32 %v421, 7
  %v423 = vsub.s32 %v420, %v422
  %v424 = vrot.slane %v417, %v423
  %425 = vrot.lane.b32.xlu0 %v424, 127
  %v426 = vpop.permute.xlu0 %425
  %427 = vrot.lane.b32.xlu0 %v405, 127
  %v428 = vpop.permute.xlu0 %427
  %v429 = vrot.slane %v426, 4
  %v430 = vrot.slane %v428, 4
  %v431 = vsel %vm64, %v429, %v430
  %v432 = vsel %vm66, %v426, %v431
  %v433 = vsel %vm66, %v428, %v430
  %436 = vst [vmem:[#allocation2 + $0xc] sm:$0xcc] %v432
  %437 = vst [vmem:[#allocation2 + $0x14] sm:$0xc] %v433
  %438 = vrot.lane.b32.xlu0 %v405, 126
  %v439 = vpop.permute.xlu0 %438
  %440 = vrot.lane.b32.xlu0 %v412, 126
  %v441 = vpop.permute.xlu0 %440
  %v442 = vrot.slane %v439, 4
  %v443 = vrot.slane %v441, 4
  %v444 = vsel %vm64, %v442, %v443
  %v445 = vsel %vm80, %v439, %v444
  %v446 = vsel %vm80, %v441, %v443
  %449 = vst [vmem:[#allocation2 + $0x24] sm:$0x33] %v445
  %450 = vst [vmem:[#allocation2 + $0x2c] sm:$0x3] %v446
  %451 = vrot.lane.b32.xlu0 %v424, 125
  %v452 = vpop.permute.xlu0 %451
  %453 = vrot.lane.b32.xlu0 %v405, 125
  %v454 = vpop.permute.xlu0 %453
  %v455 = vrot.slane %v452, 4
  %v456 = vrot.slane %v454, 4
  %v457 = vsel %vm64, %v455, %v456
  %v458 = vsel %vm94, %v452, %v457
  %v459 = vsel %vm94, %v454, %v456
  %462 = vst [vmem:[#allocation2 + $0x24] sm:$0xcc] %v458
  %463 = vst [vmem:[#allocation2 + $0x2c] sm:$0xc] %v459
  %464 = vrot.lane.b32.xlu0 %v405, 124
  %v465 = vpop.permute.xlu0 %464
  %466 = vrot.lane.b32.xlu0 %v412, 124
  %v467 = vpop.permute.xlu0 %466
  %v468 = vrot.slane %v465, 4
  %v469 = vrot.slane %v467, 4
  %v470 = vsel %vm64, %v468, %v469
  %v471 = vsel %vm108, %v465, %v470
  %v472 = vsel %vm108, %v467, %v469
  %475 = vst [vmem:[#allocation2 + $0x3c] sm:$0x33] %v471
  %476 = vst [vmem:[#allocation2 + $0x44] sm:$0x3] %v472
  %477 = vrot.lane.b32.xlu0 %v424, 108
  %v478 = vpop.permute.xlu0 %477
  %479 = vrot.lane.b32.xlu0 %v405, 108
  %v480 = vpop.permute.xlu0 %479
  %v481 = vrot.slane %v478, 4
  %v482 = vrot.slane %v480, 4
  %v483 = vsel %vm64, %v481, %v482
  %v484 = vsel %vm122, %v478, %v483
  %v485 = vsel %vm122, %v480, %v482
  %488 = vst [vmem:[#allocation2 + $0x3c] sm:$0xcc] %v484
  %489 = vst [vmem:[#allocation2 + $0x44] sm:$0xc] %v485
  %490 = vrot.lane.b32.xlu0 %v405, 107
  %v491 = vpop.permute.xlu0 %490
  %492 = vrot.lane.b32.xlu0 %v412, 107
  %v493 = vpop.permute.xlu0 %492
  %v494 = vrot.slane %v491, 4
  %v495 = vrot.slane %v493, 4
  %v496 = vsel %vm64, %v494, %v495
  %v497 = vsel %vm136, %v491, %v496
  %v498 = vsel %vm136, %v493, %v495
  %501 = vst [vmem:[#allocation2 + $0x54] sm:$0x33] %v497
  %502 = vst [vmem:[#allocation2 + $0x5c] sm:$0x3] %v498
  %503 = vrot.lane.b32.xlu0 %v424, 106
  %v504 = vpop.permute.xlu0 %503
  %505 = vrot.lane.b32.xlu0 %v405, 106
  %v506 = vpop.permute.xlu0 %505
  %v507 = vrot.slane %v504, 4
  %v508 = vrot.slane %v506, 4
  %v509 = vsel %vm64, %v507, %v508
  %v510 = vsel %vm150, %v504, %v509
  %v511 = vsel %vm150, %v506, %v508
  %514 = vst [vmem:[#allocation2 + $0x54] sm:$0xcc] %v510
  %515 = vst [vmem:[#allocation2 + $0x5c] sm:$0xc] %v511
  %516 = vrot.lane.b32.xlu0 %v405, 105
  %v517 = vpop.permute.xlu0 %516
  %518 = vrot.lane.b32.xlu0 %v412, 105
  %v519 = vpop.permute.xlu0 %518
  %v520 = vrot.slane %v517, 4
  %v521 = vrot.slane %v519, 4
  %v522 = vsel %vm64, %v520, %v521
  %v523 = vsel %vm164, %v517, %v522
  %v524 = vsel %vm164, %v519, %v521
  %527 = vst [vmem:[#allocation2 + $0x6c] sm:$0x33] %v523
  %528 = vst [vmem:[#allocation2 + $0x74] sm:$0x3] %v524
  %529 = vrot.lane.b32.xlu0 %v424, 104
  %v530 = vpop.permute.xlu0 %529
  %531 = vrot.lane.b32.xlu0 %v405, 104
  %v532 = vpop.permute.xlu0 %531
  %v533 = vrot.slane %v530, 4
  %v534 = vrot.slane %v532, 4
  %v535 = vsel %vm64, %v533, %v534
  %v536 = vsel %vm178, %v530, %v535
  %v537 = vsel %vm178, %v532, %v534
  %540 = vst [vmem:[#allocation2 + $0x6c] sm:$0xcc] %v536
  %541 = vst [vmem:[#allocation2 + $0x74] sm:$0xc] %v537
  %542 = vrot.lane.b32.xlu0 %v405, 88
  %v543 = vpop.permute.xlu0 %542
  %544 = vrot.lane.b32.xlu0 %v412, 88
  %v545 = vpop.permute.xlu0 %544
  %v546 = vrot.slane %v543, 4
  %v547 = vrot.slane %v545, 4
  %v548 = vsel %vm64, %v546, %v547
  %v549 = vsel %vm192, %v543, %v548
  %v550 = vsel %vm192, %v545, %v547
  %553 = vst [vmem:[#allocation2 + $0x84] sm:$0x33] %v549
  %554 = vst [vmem:[#allocation2 + $0x8c] sm:$0x3] %v550
  %555 = vrot.lane.b32.xlu0 %v424, 87
  %v556 = vpop.permute.xlu0 %555
  %557 = vrot.lane.b32.xlu0 %v405, 87
  %v558 = vpop.permute.xlu0 %557
  %v559 = vrot.slane %v556, 4
  %v560 = vrot.slane %v558, 4
  %v561 = vsel %vm64, %v559, %v560
  %v562 = vsel %vm206, %v556, %v561
  %v563 = vsel %vm206, %v558, %v560
  %566 = vst [vmem:[#allocation2 + $0x84] sm:$0xcc] %v562
  %567 = vst [vmem:[#allocation2 + $0x8c] sm:$0xc] %v563
  %568 = vrot.lane.b32.xlu0 %v405, 86
  %v569 = vpop.permute.xlu0 %568
  %570 = vrot.lane.b32.xlu0 %v412, 86
  %v571 = vpop.permute.xlu0 %570
  %v572 = vrot.slane %v569, 4
  %v573 = vrot.slane %v571, 4
  %v574 = vsel %vm64, %v572, %v573
  %v575 = vsel %vm220, %v569, %v574
  %v576 = vsel %vm220, %v571, %v573
  %579 = vst [vmem:[#allocation2 + $0x9c] sm:$0x33] %v575
  %580 = vst [vmem:[#allocation2 + $0xa4] sm:$0x3] %v576
  %581 = vrot.lane.b32.xlu0 %v424, 85
  %v582 = vpop.permute.xlu0 %581
  %583 = vrot.lane.b32.xlu0 %v405, 85
  %v584 = vpop.permute.xlu0 %583
  %v585 = vrot.slane %v582, 4
  %v586 = vrot.slane %v584, 4
  %v587 = vsel %vm64, %v585, %v586
  %v588 = vsel %vm234, %v582, %v587
  %v589 = vsel %vm234, %v584, %v586
  %592 = vst [vmem:[#allocation2 + $0x9c] sm:$0xcc] %v588
  %593 = vst [vmem:[#allocation2 + $0xa4] sm:$0xc] %v589
  %594 = vrot.lane.b32.xlu0 %v405, 84
  %v595 = vpop.permute.xlu0 %594
  %596 = vrot.lane.b32.xlu0 %v412, 84
  %v597 = vpop.permute.xlu0 %596
  %v598 = vrot.slane %v595, 4
  %v599 = vrot.slane %v597, 4
  %v600 = vsel %vm64, %v598, %v599
  %v601 = vsel %vm248, %v595, %v600
  %v602 = vsel %vm248, %v597, %v599
  %605 = vst [vmem:[#allocation2 + $0xb4] sm:$0x33] %v601
  %606 = vst [vmem:[#allocation2 + $0xbc] sm:$0x3] %v602
  %607 = vrot.lane.b32.xlu0 %v424, 68
  %v608 = vpop.permute.xlu0 %607
  %609 = vrot.lane.b32.xlu0 %v405, 68
  %v610 = vpop.permute.xlu0 %609
  %v611 = vrot.slane %v608, 4
  %v612 = vrot.slane %v610, 4
  %v613 = vsel %vm64, %v611, %v612
  %v614 = vsel %vm262, %v608, %v613
  %v615 = vsel %vm262, %v610, %v612
  %618 = vst [vmem:[#allocation2 + $0xb4] sm:$0xcc] %v614
  %619 = vst [vmem:[#allocation2 + $0xbc] sm:$0xc] %v615
  %620 = vrot.lane.b32.xlu0 %v405, 67
  %v621 = vpop.permute.xlu0 %620
  %622 = vrot.lane.b32.xlu0 %v412, 67
  %v623 = vpop.permute.xlu0 %622
  %v624 = vrot.slane %v621, 4
  %v625 = vrot.slane %v623, 4
  %v626 = vsel %vm64, %v624, %v625
  %v627 = vsel %vm276, %v621, %v626
  %v628 = vsel %vm276, %v623, %v625
  %631 = vst [vmem:[#allocation2 + $0xcc] sm:$0x33] %v627
  %632 = vst [vmem:[#allocation2 + $0xd4] sm:$0x3] %v628
  %633 = vrot.lane.b32.xlu0 %v424, 66
  %v634 = vpop.permute.xlu0 %633
  %635 = vrot.lane.b32.xlu0 %v405, 66
  %v636 = vpop.permute.xlu0 %635
  %v637 = vrot.slane %v634, 4
  %v638 = vrot.slane %v636, 4
  %v639 = vsel %vm64, %v637, %v638
  %v640 = vsel %vm290, %v634, %v639
  %v641 = vsel %vm290, %v636, %v638
  %644 = vst [vmem:[#allocation2 + $0xcc] sm:$0xcc] %v640
  %645 = vst [vmem:[#allocation2 + $0xd4] sm:$0xc] %v641
  %646 = vrot.lane.b32.xlu0 %v405, 65
  %v647 = vpop.permute.xlu0 %646
  %648 = vrot.lane.b32.xlu0 %v412, 65
  %v649 = vpop.permute.xlu0 %648
  %v650 = vrot.slane %v647, 4
  %v651 = vrot.slane %v649, 4
  %v652 = vsel %vm64, %v650, %v651
  %v653 = vsel %vm304, %v647, %v652
  %v654 = vsel %vm304, %v649, %v651
  %657 = vst [vmem:[#allocation2 + $0xe4] sm:$0x33] %v653
  %658 = vst [vmem:[#allocation2 + $0xec] sm:$0x3] %v654
  %659 = vrot.lane.b32.xlu0 %v424, 64
  %v660 = vpop.permute.xlu0 %659
  %661 = vrot.lane.b32.xlu0 %v405, 64
  %v662 = vpop.permute.xlu0 %661
  %v663 = vrot.slane %v660, 4
  %v664 = vrot.slane %v662, 4
  %v665 = vsel %vm64, %v663, %v664
  %v666 = vsel %vm318, %v660, %v665
  %v667 = vsel %vm318, %v662, %v664
  %670 = vst [vmem:[#allocation2 + $0xe4] sm:$0xcc] %v666
  %671 = vst [vmem:[#allocation2 + $0xec] sm:$0xc] %v667
  %672 = vrot.lane.b32.xlu0 %v405, 48
  %v673 = vpop.permute.xlu0 %672
  %674 = vrot.lane.b32.xlu0 %v412, 48
  %v675 = vpop.permute.xlu0 %674
  %v676 = vrot.slane %v673, 4
  %v677 = vrot.slane %v675, 4
  %v678 = vsel %vm64, %v676, %v677
  %v679 = vsel %vm332, %v673, %v678
  %v680 = vsel %vm332, %v675, %v677
  %683 = vst [vmem:[#allocation2 + $0xfc] sm:$0x33] %v679
  %684 = vst [vmem:[#allocation2 + $0x104] sm:$0x3] %v680
  %685 = vrot.lane.b32.xlu0 %v424, 47
  %v686 = vpop.permute.xlu0 %685
  %687 = vrot.lane.b32.xlu0 %v405, 47
  %v688 = vpop.permute.xlu0 %687
  %v689 = vrot.slane %v686, 4
  %v690 = vrot.slane %v688, 4
  %v691 = vsel %vm64, %v689, %v690
  %v692 = vsel %vm346, %v686, %v691
  %v693 = vsel %vm346, %v688, %v690
  %696 = vst [vmem:[#allocation2 + $0xfc] sm:$0xcc] %v692
  %697 = vst [vmem:[#allocation2 + $0x104] sm:$0xc] %v693
  %698 = vrot.lane.b32.xlu0 %v405, 46
  %v699 = vpop.permute.xlu0 %698
  %700 = vrot.lane.b32.xlu0 %v412, 46
  %v701 = vpop.permute.xlu0 %700
  %v702 = vrot.slane %v699, 4
  %v703 = vrot.slane %v701, 4
  %v704 = vsel %vm64, %v702, %v703
  %v705 = vsel %vm360, %v699, %v704
  %v706 = vsel %vm360, %v701, %v703
  %709 = vst [vmem:[#allocation2 + $0x114] sm:$0x33] %v705
  %710 = vst [vmem:[#allocation2 + $0x11c] sm:$0x3] %v706
  %711 = vrot.lane.b32.xlu0 %v424, 45
  %v712 = vpop.permute.xlu0 %711
  %713 = vrot.lane.b32.xlu0 %v405, 45
  %v714 = vpop.permute.xlu0 %713
  %v715 = vrot.slane %v712, 4
  %v716 = vrot.slane %v714, 4
  %v717 = vsel %vm64, %v715, %v716
  %v718 = vsel %vm374, %v712, %v717
  %v719 = vsel %vm374, %v714, %v716
  %722 = vst [vmem:[#allocation2 + $0x114] sm:$0xcc] %v718
  %723 = vst [vmem:[#allocation2 + $0x11c] sm:$0xc] %v719
  %724 = vrot.lane.b32.xlu0 %v405, 44
  %v725 = vpop.permute.xlu0 %724
  %726 = vrot.lane.b32.xlu0 %v412, 44
  %v727 = vpop.permute.xlu0 %726
  %v728 = vrot.slane %v725, 4
  %v729 = vrot.slane %v727, 4
  %v730 = vsel %vm64, %v728, %v729
  %v731 = vsel %vm388, %v725, %v730
  %v732 = vsel %vm388, %v727, %v729
  %735 = vst [vmem:[#allocation2 + $0x12c] sm:$0x33] %v731
  %736 = vst [vmem:[#allocation2 + $0x134] sm:$0x3] %v732
  %v737 = vld [vmem:[%s1] sm:$0xf]
  %v738 = vld [vmem:[%s1 + $0x4] sm:$0xf]
  %v739 = vld [vmem:[#allocation2] sm:$0xff]
  %v740 = vld [vmem:[#allocation2 + $0x8] sm:$0xff]
  %v741 = vld [vmem:[#allocation2 + $0x10] sm:$0xff]
  %v742 = vld [vmem:[#allocation2 + $0x18] sm:$0xff]
  %v743 = vld [vmem:[#allocation2 + $0x20] sm:$0xff]
  %v744 = vld [vmem:[#allocation2 + $0x28] sm:$0xff]
  %v745 = vld [vmem:[#allocation2 + $0x30] sm:$0xff]
  %v746 = vld [vmem:[#allocation2 + $0x38] sm:$0xff]
  %v747 = vld [vmem:[#allocation2 + $0x40] sm:$0xff]
  %v748 = vld [vmem:[#allocation2 + $0x48] sm:$0xff]
  %v749 = vld [vmem:[#allocation2 + $0x50] sm:$0xff]
  %v750 = vld [vmem:[#allocation2 + $0x58] sm:$0xff]
  %v751 = vld [vmem:[#allocation2 + $0x60] sm:$0xff]
  %v752 = vld [vmem:[#allocation2 + $0x68] sm:$0xff]
  %v753 = vld [vmem:[#allocation2 + $0x70] sm:$0xff]
  %v754 = vld [vmem:[#allocation2 + $0x78] sm:$0xff]
  %v755 = vld [vmem:[#allocation2 + $0x80] sm:$0xff]
  %v756 = vld [vmem:[#allocation2 + $0x88] sm:$0xff]
  %v757 = vld [vmem:[#allocation2 + $0x90] sm:$0xff]
  %v758 = vld [vmem:[#allocation2 + $0x98] sm:$0xff]
  %v759 = vld [vmem:[#allocation2 + $0xa0] sm:$0xff]
  %v760 = vld [vmem:[#allocation2 + $0xa8] sm:$0xff]
  %v761 = vld [vmem:[#allocation2 + $0xb0] sm:$0xff]
  %v762 = vld [vmem:[#allocation2 + $0xb8] sm:$0xff]
  %v763 = vld [vmem:[#allocation2 + $0xc0] sm:$0xff]
  %v764 = vld [vmem:[#allocation2 + $0xc8] sm:$0xff]
  %v765 = vld [vmem:[#allocation2 + $0xd0] sm:$0xff]
  %v766 = vld [vmem:[#allocation2 + $0xd8] sm:$0xff]
  %v767 = vld [vmem:[#allocation2 + $0xe0] sm:$0xff]
  %v768 = vld [vmem:[#allocation2 + $0xe8] sm:$0xff]
  %v769 = vld [vmem:[#allocation2 + $0xf0] sm:$0xff]
  %v770 = vld [vmem:[#allocation2 + $0xf8] sm:$0xff]
  %v771 = vld [vmem:[#allocation2 + $0x100] sm:$0xff]
  %v772 = vld [vmem:[#allocation2 + $0x108] sm:$0xff]
  %v773 = vld [vmem:[#allocation2 + $0x110] sm:$0xff]
  %v774 = vld [vmem:[#allocation2 + $0x118] sm:$0xff]
  %v775 = vld [vmem:[#allocation2 + $0x120] sm:$0x77]
  %v776 = vld [vmem:[#allocation2 + $0x128] sm:$0x77]
  %v777 = vld [vmem:[#allocation2 + $0x130] sm:$0x77]
  %v780 = vunpack.c.l.b16 %v737
  %v781 = vunpack.c.l.b16 %v738
  %v782 = vpack.c.b16 %v781, %v780
  %v822 = vunpack.c.l.b16 %v739
  %v823 = vunpack.c.h.b16 %v739
  %v824 = vunpack.c.l.b16 %v740
  %v825 = vunpack.c.h.b16 %v740
  %v826 = vunpack.c.l.b16 %v741
  %v827 = vunpack.c.h.b16 %v741
  %v828 = vunpack.c.l.b16 %v742
  %v829 = vunpack.c.h.b16 %v742
  %v830 = vunpack.c.l.b16 %v743
  %v831 = vunpack.c.h.b16 %v743
  %v832 = vunpack.c.l.b16 %v744
  %v833 = vunpack.c.h.b16 %v744
  %v834 = vunpack.c.l.b16 %v745
  %v835 = vunpack.c.h.b16 %v745
  %v836 = vunpack.c.l.b16 %v746
  %v837 = vunpack.c.h.b16 %v746
  %v838 = vunpack.c.l.b16 %v747
  %v839 = vunpack.c.h.b16 %v747
  %v840 = vunpack.c.l.b16 %v748
  %v841 = vunpack.c.h.b16 %v748
  %v842 = vunpack.c.l.b16 %v749
  %v843 = vunpack.c.h.b16 %v749
  %v844 = vunpack.c.l.b16 %v750
  %v845 = vunpack.c.h.b16 %v750
  %v846 = vunpack.c.l.b16 %v751
  %v847 = vunpack.c.h.b16 %v751
  %v848 = vunpack.c.l.b16 %v752
  %v849 = vunpack.c.h.b16 %v752
  %v850 = vunpack.c.l.b16 %v753
  %v851 = vunpack.c.h.b16 %v753
  %v852 = vunpack.c.l.b16 %v754
  %v853 = vunpack.c.h.b16 %v754
  %v854 = vunpack.c.l.b16 %v755
  %v855 = vunpack.c.h.b16 %v755
  %v856 = vunpack.c.l.b16 %v756
  %v857 = vunpack.c.h.b16 %v756
  %v858 = vunpack.c.l.b16 %v757
  %v859 = vunpack.c.h.b16 %v757
  %v860 = vunpack.c.l.b16 %v758
  %v861 = vunpack.c.h.b16 %v758
  %v862 = vunpack.c.l.b16 %v759
  %v863 = vunpack.c.h.b16 %v759
  %v864 = vunpack.c.l.b16 %v760
  %v865 = vunpack.c.h.b16 %v760
  %v866 = vunpack.c.l.b16 %v761
  %v867 = vunpack.c.h.b16 %v761
  %v868 = vunpack.c.l.b16 %v762
  %v869 = vunpack.c.h.b16 %v762
  %v870 = vunpack.c.l.b16 %v763
  %v871 = vunpack.c.h.b16 %v763
  %v872 = vunpack.c.l.b16 %v764
  %v873 = vunpack.c.h.b16 %v764
  %v874 = vunpack.c.l.b16 %v765
  %v875 = vunpack.c.h.b16 %v765
  %v876 = vunpack.c.l.b16 %v766
  %v877 = vunpack.c.h.b16 %v766
  %v878 = vunpack.c.l.b16 %v767
  %v879 = vunpack.c.h.b16 %v767
  %v880 = vunpack.c.l.b16 %v768
  %v881 = vunpack.c.h.b16 %v768
  %v882 = vunpack.c.l.b16 %v769
  %v883 = vunpack.c.h.b16 %v769
  %v884 = vunpack.c.l.b16 %v770
  %v885 = vunpack.c.h.b16 %v770
  %v886 = vunpack.c.l.b16 %v771
  %v887 = vunpack.c.h.b16 %v771
  %v888 = vunpack.c.l.b16 %v772
  %v889 = vunpack.c.h.b16 %v772
  %v890 = vunpack.c.l.b16 %v773
  %v891 = vunpack.c.h.b16 %v773
  %v892 = vunpack.c.l.b16 %v774
  %v893 = vunpack.c.h.b16 %v774
  %v894 = vunpack.c.l.b16 %v775
  %v895 = vunpack.c.h.b16 %v775
  %v896 = vunpack.c.l.b16 %v776
  %v897 = vunpack.c.h.b16 %v776
  %v898 = vunpack.c.l.b16 %v777
  %v899 = vunpack.c.h.b16 %v777
  %v900 = vpack.c.b16 %v828, %v822
  %v901 = vpack.c.b16 %v829, %v823
  %v902 = vpack.c.b16 %v830, %v824
  %v903 = vpack.c.b16 %v831, %v825
  %v904 = vpack.c.b16 %v832, %v826
  %v905 = vpack.c.b16 %v833, %v827
  %v906 = vpack.c.b16 %v840, %v834
  %v907 = vpack.c.b16 %v841, %v835
  %v908 = vpack.c.b16 %v842, %v836
  %v909 = vpack.c.b16 %v843, %v837
  %v910 = vpack.c.b16 %v844, %v838
  %v911 = vpack.c.b16 %v845, %v839
  %v912 = vpack.c.b16 %v852, %v846
  %v913 = vpack.c.b16 %v853, %v847
  %v914 = vpack.c.b16 %v854, %v848
  %v915 = vpack.c.b16 %v855, %v849
  %v916 = vpack.c.b16 %v856, %v850
  %v917 = vpack.c.b16 %v857, %v851
  %v918 = vpack.c.b16 %v864, %v858
  %v919 = vpack.c.b16 %v865, %v859
  %v920 = vpack.c.b16 %v866, %v860
  %v921 = vpack.c.b16 %v867, %v861
  %v922 = vpack.c.b16 %v868, %v862
  %v923 = vpack.c.b16 %v869, %v863
  %v924 = vpack.c.b16 %v876, %v870
  %v925 = vpack.c.b16 %v877, %v871
  %v926 = vpack.c.b16 %v878, %v872
  %v927 = vpack.c.b16 %v879, %v873
  %v928 = vpack.c.b16 %v880, %v874
  %v929 = vpack.c.b16 %v881, %v875
  %v930 = vpack.c.b16 %v888, %v882
  %v931 = vpack.c.b16 %v889, %v883
  %v932 = vpack.c.b16 %v890, %v884
  %v933 = vpack.c.b16 %v891, %v885
  %v934 = vpack.c.b16 %v892, %v886
  %v935 = vpack.c.b16 %v893, %v887
  %v936 = vpack.c.b16 %v894, %v894
  %v937 = vpack.c.b16 %v895, %v895
  %v938 = vpack.c.b16 %v896, %v896
  %v939 = vpack.c.b16 %v897, %v897
  %v940 = vpack.c.b16 %v898, %v898
  %v941 = vpack.c.b16 %v899, %v899
  %vm978 = vcmask 826368
  %v980 = vsel %vm978, %v782, 0
  %vm982 = vcmask 1041408
  %vm983 = vcmask 1042432
  %v984 = vsel %vm982, 4294967295, 65535
  %v985 = vsel %vm983, %v984, 0
  %v987 = vand.u32 %v936, %v985
  %v990 = vand.u32 %v937, %v985
  %v993 = vand.u32 %v938, %v985
  %v996 = vand.u32 %v939, %v985
  %v999 = vand.u32 %v940, %v985
  %v1002 = vand.u32 %v941, %v985
  %1004 = vmatprep.subr.bf16.mxu0 0
  %1005 = vmatpush1.bf16.msra.mxu0 0
  %1006 = vmatprep.subr.bf16.mxu0 %v990
  %1007 = vmatpush1.bf16.msra.mxu0 %v987
  %1008 = vmatprep.subr.bf16.mxu0 %v931
  %1009 = vmatpush1.bf16.msra.mxu0 %v930
  %1010 = vmatprep.subr.bf16.mxu0 %v925
  %1011 = vmatpush1.bf16.msra.mxu0 %v924
  %1012 = vmatprep.subr.bf16.mxu0 %v919
  %1013 = vmatpush1.bf16.msra.mxu0 %v918
  %1014 = vmatprep.subr.bf16.mxu0 %v913
  %1015 = vmatpush1.bf16.msra.mxu0 %v912
  %1016 = vmatprep.subr.bf16.mxu0 %v907
  %1017 = vmatpush1.bf16.msra.mxu0 %v906
  %1018 = vmatprep.subr.bf16.mxu0 %v901
  %1019 = vmatpush1.bf16.msra.mxu0 %v900
  %1020 = vmatprep.subr.bf16.mxu0 0
  %1021 = vmatpush2.bf16.msra.mxu0 0
  %1022 = vmatprep.subr.bf16.mxu0 0
  %1023 = vmatpush2.bf16.msra.mxu0 0
  %1024 = vmatprep.subr.bf16.mxu0 0
  %1025 = vmatpush2.bf16.msra.mxu0 0
  %1026 = vmatprep.subr.bf16.mxu0 0
  %1027 = vmatpush2.bf16.msra.mxu0 0
  %1028 = vmatprep.subr.bf16.mxu0 0
  %1029 = vmatpush2.bf16.msra.mxu0 0
  %1030 = vmatprep.subr.bf16.mxu0 0
  %1031 = vmatpush2.bf16.msra.mxu0 0
  %1032 = vmatprep.subr.bf16.mxu0 0
  %1033 = vmatpush2.bf16.msra.mxu0 0
  %1034 = vmatprep.subr.bf16.mxu0 0
  %1035 = vmatpush2.bf16.msra.mxu0 0
  %1036 = vmatprep.mubr.bf16.mxu0 0
  %1037 = vmatmul.mubr.bf16.gmra.mxu0 %v980
  %v1038 = vpop.f32.mrf.mxu0
  %v1039 = vadd.f32 0.0, %v1038
  %v1040 = vpop.f32.mrf.mxu0
  %v1041 = vadd.f32 0.0, %v1040
  %v1042 = vpop.f32.mrf.mxu0
  %v1043 = vadd.f32 0.0, %v1042
  %v1044 = vpop.f32.mrf.mxu0
  %v1045 = vadd.f32 0.0, %v1044
  %1046 = vdwg.mxu0
  %1047 = vmatprep.subr.bf16.mxu0 0
  %1048 = vmatpush1.bf16.msra.mxu0 0
  %1049 = vmatprep.subr.bf16.mxu0 %v996
  %1050 = vmatpush1.bf16.msra.mxu0 %v993
  %1051 = vmatprep.subr.bf16.mxu0 %v933
  %1052 = vmatpush1.bf16.msra.mxu0 %v932
  %1053 = vmatprep.subr.bf16.mxu0 %v927
  %1054 = vmatpush1.bf16.msra.mxu0 %v926
  %1055 = vmatprep.subr.bf16.mxu0 %v921
  %1056 = vmatpush1.bf16.msra.mxu0 %v920
  %1057 = vmatprep.subr.bf16.mxu0 %v915
  %1058 = vmatpush1.bf16.msra.mxu0 %v914
  %1059 = vmatprep.subr.bf16.mxu0 %v909
  %1060 = vmatpush1.bf16.msra.mxu0 %v908
  %1061 = vmatprep.subr.bf16.mxu0 %v903
  %1062 = vmatpush1.bf16.msra.mxu0 %v902
  %1063 = vmatprep.subr.bf16.mxu0 0
  %1064 = vmatpush2.bf16.msra.mxu0 0
  %1065 = vmatprep.subr.bf16.mxu0 0
  %1066 = vmatpush2.bf16.msra.mxu0 0
  %1067 = vmatprep.subr.bf16.mxu0 0
  %1068 = vmatpush2.bf16.msra.mxu0 0
  %1069 = vmatprep.subr.bf16.mxu0 0
  %1070 = vmatpush2.bf16.msra.mxu0 0
  %1071 = vmatprep.subr.bf16.mxu0 0
  %1072 = vmatpush2.bf16.msra.mxu0 0
  %1073 = vmatprep.subr.bf16.mxu0 0
  %1074 = vmatpush2.bf16.msra.mxu0 0
  %1075 = vmatprep.subr.bf16.mxu0 0
  %1076 = vmatpush2.bf16.msra.mxu0 0
  %1077 = vmatprep.subr.bf16.mxu0 0
  %1078 = vmatpush2.bf16.msra.mxu0 0
  %1079 = vmatprep.mubr.bf16.mxu0 0
  %1080 = vmatmul.mubr.bf16.gmra.mxu0 %v980
  %v1081 = vpop.f32.mrf.mxu0
  %v1082 = vadd.f32 0.0, %v1081
  %v1083 = vpop.f32.mrf.mxu0
  %v1084 = vadd.f32 0.0, %v1083
  %v1085 = vpop.f32.mrf.mxu0
  %v1086 = vadd.f32 0.0, %v1085
  %v1087 = vpop.f32.mrf.mxu0
  %v1088 = vadd.f32 0.0, %v1087
  %1089 = vdwg.mxu0
  %1090 = vmatprep.subr.bf16.mxu0 0
  %1091 = vmatpush1.bf16.msra.mxu0 0
  %1092 = vmatprep.subr.bf16.mxu0 %v1002
  %1093 = vmatpush1.bf16.msra.mxu0 %v999
  %1094 = vmatprep.subr.bf16.mxu0 %v935
  %1095 = vmatpush1.bf16.msra.mxu0 %v934
  %1096 = vmatprep.subr.bf16.mxu0 %v929
  %1097 = vmatpush1.bf16.msra.mxu0 %v928
  %1098 = vmatprep.subr.bf16.mxu0 %v923
  %1099 = vmatpush1.bf16.msra.mxu0 %v922
  %1100 = vmatprep.subr.bf16.mxu0 %v917
  %1101 = vmatpush1.bf16.msra.mxu0 %v916
  %1102 = vmatprep.subr.bf16.mxu0 %v911
  %1103 = vmatpush1.bf16.msra.mxu0 %v910
  %1104 = vmatprep.subr.bf16.mxu0 %v905
  %1105 = vmatpush1.bf16.msra.mxu0 %v904
  %1106 = vmatprep.subr.bf16.mxu0 0
  %1107 = vmatpush2.bf16.msra.mxu0 0
  %1108 = vmatprep.subr.bf16.mxu0 0
  %1109 = vmatpush2.bf16.msra.mxu0 0
  %1110 = vmatprep.subr.bf16.mxu0 0
  %1111 = vmatpush2.bf16.msra.mxu0 0
  %1112 = vmatprep.subr.bf16.mxu0 0
  %1113 = vmatpush2.bf16.msra.mxu0 0
  %1114 = vmatprep.subr.bf16.mxu0 0
  %1115 = vmatpush2.bf16.msra.mxu0 0
  %1116 = vmatprep.subr.bf16.mxu0 0
  %1117 = vmatpush2.bf16.msra.mxu0 0
  %1118 = vmatprep.subr.bf16.mxu0 0
  %1119 = vmatpush2.bf16.msra.mxu0 0
  %1120 = vmatprep.subr.bf16.mxu0 0
  %1121 = vmatpush2.bf16.msra.mxu0 0
  %1122 = vmatprep.mubr.bf16.mxu0 0
  %1123 = vmatmul.mubr.bf16.gmra.mxu0 %v980
  %v1124 = vpop.f32.mrf.mxu0
  %v1125 = vadd.f32 0.0, %v1124
  %v1126 = vpop.f32.mrf.mxu0
  %v1127 = vadd.f32 0.0, %v1126
  %v1128 = vpop.f32.mrf.mxu0
  %v1129 = vadd.f32 0.0, %v1128
  %v1130 = vpop.f32.mrf.mxu0
  %v1131 = vadd.f32 0.0, %v1130
  %1132 = vdwg.mxu0
  %v1133 = vmax.f32 %v1039, %v1043
  %v1134 = vmax.f32 %v1041, %v1045
  %v1135 = vmax.f32 %v1082, %v1086
  %v1136 = vmax.f32 %v1084, %v1088
  %v1137 = vmax.f32 %v1125, %v1129
  %v1138 = vmax.f32 %v1127, %v1131
  %1139 = vst [vmem:[%s2] sm:$0xff] %v1133
  %1140 = vst [vmem:[%s2 + $0x8] sm:$0xff] %v1134
  %1141 = vst [vmem:[%s2 + $0x10] sm:$0xff] %v1135
  %s1142 = scalar_lea.vmem %s2, 24
  %1143 = vst [vmem:[%s1142] sm:$0xff] %v1136
  %1144 = vst [vmem:[%s1142 + $0x8] sm:$0xff] %v1137
  %1145 = vst [vmem:[%s1142 + $0x10] sm:$0xff] %v1138
  // Predicated region
  $region10: #{inception_mfm_forward.1} parent=0 // pred_check
    _
  $region11: #{inception_mfm_forward.1} parent=0 // pred_check_branch
    %1147 = sbr.rel (0) target = $region13
  $region12: #{inception_mfm_forward.1} parent=0 // pred_region
    _
  $region13: #{inception_mfm_forward.1} parent=0 // pred_fallthru
    _
  // Predicated region
  $region14: #{inception_mfm_forward.1} parent=0 // pred_check
    _
  $region15: #{inception_mfm_forward.1} parent=0 // pred_check_branch
    %1149 = sbr.rel (0) target = $region17
  $region16: #{inception_mfm_forward.1} parent=0 // pred_region
    _
  $region17: #{inception_mfm_forward.1} parent=0 // pred_fallthru
    _

</llo_original>
